<compile_context>
chip_gen: v5e
topology: v5e:2x2
jax: 0.10.0
libtpu: 0.0.40
codegen_flags: <defaults>
</compile_context>

<pallas_src>
import jax
import jax.numpy as jnp
from jax import lax
from jax.experimental import pallas as pl
from jax.experimental.pallas import tpu as pltpu

# ---- small DistilBERT-like config ------------------------------------------
VOCAB = 100
MAX_POS = 16
HIDDEN = 32
N_HEADS = 4
HEAD_DIM = HIDDEN // N_HEADS
FFN = 64
N_LAYERS = 2
LN_EPS = 1e-12  # DistilBERT LayerNorm eps


# ---- in-kernel helpers -------------------------------------------------------
def _layer_norm(x, gamma, beta):
    mu = jnp.mean(x, axis=-1, keepdims=True)
    var = jnp.mean((x - mu) ** 2, axis=-1, keepdims=True)
    return (x - mu) * lax.rsqrt(var + LN_EPS) * gamma + beta


# ---- fused encoder kernel ----------------------------------------------------
def _make_encoder_kernel(seq):
    """Fused per-batch encoder kernel, closed over static seq length."""
    scale = 1.0 / (HEAD_DIM ** 0.5)
    f32 = jnp.float32

    def kernel(ids_ref, mask_ref, wemb_ref, pemb_ref, eg_ref, eb_ref,
               wqkv_ref, bqkv_ref, wo_ref, bo_ref, ln1g_ref, ln1b_ref,
               w1_ref, b1_ref, w2_ref, b2_ref, ln2g_ref, ln2b_ref,
               o_ref, scores_scr, ctx_scr):
        # ---- embedding gather fused in-kernel: one-hot (S,VOCAB) @ (VOCAB,H) on MXU ----
        ids = ids_ref[0]                                                   # (S, 1) int32
        onehot = (lax.broadcasted_iota(jnp.int32, (seq, VOCAB), 1) == ids).astype(f32)
        x = jnp.dot(onehot, wemb_ref[...], preferred_element_type=f32)     # (S, H)
        x = _layer_norm(x + pemb_ref[0:seq, :], eg_ref[...], eb_ref[...])

        # ---- additive key mask built in-kernel: 0 attended / -1e30 padded, (1, S) ----
        amask = jnp.where(mask_ref[0] > 0, 0.0, -1e30).astype(f32)

        for l in range(N_LAYERS):                 # static unroll; weights stay in VMEM
            last = (l == N_LAYERS - 1)
            nq = 1 if last else seq               # last layer: only the CLS query row

            # fused QKV projection (one MXU op over all rows)
            qkv = jnp.dot(x, wqkv_ref[l], preferred_element_type=f32) + bqkv_ref[l]

            # scores for all heads stacked on the SUBLANE axis -> one softmax for all heads
            for h in range(N_HEADS):
                c = h * HEAD_DIM
                qh = qkv[0:nq, c:c + HEAD_DIM]
                kh = qkv[:, HIDDEN + c:HIDDEN + c + HEAD_DIM]
                sh = lax.dot_general(qh, kh, (((1,), (1,)), ((), ())),     # no kh.T
                                     preferred_element_type=f32)           # (nq, S)
                scores_scr[h * nq:(h + 1) * nq, :] = sh * scale + amask

            s = scores_scr[0:N_HEADS * nq, :]                              # (NH*nq, S)
            m = jnp.max(s, axis=-1, keepdims=True)
            p = jnp.exp(s - m)
            p = p * pl.reciprocal(jnp.sum(p, axis=-1, keepdims=True), approx=True)

            # per-head P @ V written straight into the ctx scratch (no concatenates)
            for h in range(N_HEADS):
                c = h * HEAD_DIM
                vh = qkv[:, 2 * HIDDEN + c:2 * HIDDEN + c + HEAD_DIM]
                ctx_scr[0:nq, c:c + HEAD_DIM] = jnp.dot(
                    p[h * nq:(h + 1) * nq, :], vh, preferred_element_type=f32)

            ctx = ctx_scr[0:nq, :]                                         # (nq, H)
            xq = x[0:nq, :]

            attn = jnp.dot(ctx, wo_ref[l], preferred_element_type=f32) + bo_ref[l]
            sa = _layer_norm(attn + xq, ln1g_ref[l], ln1b_ref[l])          # post-LN
            h1 = jax.nn.gelu(
                jnp.dot(sa, w1_ref[l], preferred_element_type=f32) + b1_ref[l],
                approximate=True)                                          # tanh -> EUP
            ffn = jnp.dot(h1, w2_ref[l], preferred_element_type=f32) + b2_ref[l]
            out = _layer_norm(ffn + sa, ln2g_ref[l], ln2b_ref[l])

            if last:
                o_ref[0] = out          # (1, H): only the CLS row is ever emitted
            else:
                x = out

    return kernel


# ---- wrapper -----------------------------------------------------------------
def text_encoder_forward(params, input_ids, attention_mask):
    """Returns last_hidden_state[:, 0, :] — shape (B, HIDDEN)."""
    B, S = input_ids.shape
    assert S <= MAX_POS, "sequence length exceeds position-embedding table"

    # Free metadata reshapes so per-batch blocks keep their last two dims == full dims.
    ids3 = input_ids.reshape(B, S, 1).astype(jnp.int32)        # ids as a column
    mask3 = attention_mask.reshape(B, 1, S).astype(jnp.int32)  # key mask as a row

    weights = (params["word_emb"], params["pos_emb"],
               params["emb_ln_g"], params["emb_ln_b"],
               params["wqkv"], params["bqkv"], params["wo"], params["bo"],
               params["ln1g"], params["ln1b"], params["w1"], params["b1"],
               params["w2"], params["b2"], params["ln2g"], params["ln2b"])

    def bcast(shape):  # weight spec: same block for every batch program (VMEM-resident)
        return pl.BlockSpec(tuple(shape), lambda b, _z=(0,) * len(shape): _z)

    in_specs = ([pl.BlockSpec((1, S, 1), lambda b: (b, 0, 0)),      # input_ids
                 pl.BlockSpec((1, 1, S), lambda b: (b, 0, 0))]      # attention_mask
                + [bcast(w.shape) for w in weights])

    out = pl.pallas_call(
        _make_encoder_kernel(S),
        grid=(B,),
        in_specs=in_specs,
        out_specs=pl.BlockSpec((1, 1, HIDDEN), lambda b: (b, 0, 0)),
        out_shape=jax.ShapeDtypeStruct((B, 1, HIDDEN), jnp.float32),
        scratch_shapes=[pltpu.VMEM((N_HEADS * S, S), jnp.float32),  # head-stacked scores
                        pltpu.VMEM((S, HIDDEN), jnp.float32)],      # attention context
        compiler_params=pltpu.CompilerParams(
            dimension_semantics=("parallel",)),                     # 2 TCs on v7x
    )(ids3, mask3, *weights)
    # TODO(synk): if this feeds further kernels at scale, emit a lane-dense (>=128-wide)
    # slab instead of a 32-lane output.
    return out.reshape(B, HIDDEN)


# ---- deterministic parameter init (synthetic, no checkpoint) ------------------
def make_params(seed=0):
    key = jax.random.PRNGKey(seed)

    def w(k, shape):
        return (0.02 * jax.random.normal(k, shape)).astype(jnp.float32)

    k_emb, k_pos, *k_layers = jax.random.split(key, 2 + N_LAYERS)

    wqkv, wo, w1, w2 = [], [], [], []
    for kl in k_layers:
        ks = jax.random.split(kl, 6)
        wq = w(ks[0], (HIDDEN, HIDDEN))
        wk = w(ks[1], (HIDDEN, HIDDEN))
        wv = w(ks[2], (HIDDEN, HIDDEN))
        wqkv.append(jnp.concatenate([wq, wk, wv], axis=1))   # (H, 3H)
        wo.append(w(ks[3], (HIDDEN, HIDDEN)))
        w1.append(w(ks[4], (HIDDEN, FFN)))
        w2.append(w(ks[5], (FFN, HIDDEN)))

    L = N_LAYERS
    return {
        "word_emb": w(k_emb, (VOCAB, HIDDEN)),
        "pos_emb": w(k_pos, (MAX_POS, HIDDEN)),
        "emb_ln_g": jnp.ones((1, HIDDEN), jnp.float32),
        "emb_ln_b": jnp.zeros((1, HIDDEN), jnp.float32),
        # per-layer weights stacked on a leading layer axis (loaded once, VMEM-resident)
        "wqkv": jnp.stack(wqkv),                                   # (L, H, 3H)
        "bqkv": jnp.zeros((L, 1, 3 * HIDDEN), jnp.float32),
        "wo": jnp.stack(wo),                                       # (L, H, H)
        "bo": jnp.zeros((L, 1, HIDDEN), jnp.float32),
        "ln1g": jnp.ones((L, 1, HIDDEN), jnp.float32),
        "ln1b": jnp.zeros((L, 1, HIDDEN), jnp.float32),
        "w1": jnp.stack(w1),                                       # (L, H, FFN)
        "b1": jnp.zeros((L, 1, FFN), jnp.float32),
        "w2": jnp.stack(w2),                                       # (L, FFN, H)
        "b2": jnp.zeros((L, 1, HIDDEN), jnp.float32),
        "ln2g": jnp.ones((L, 1, HIDDEN), jnp.float32),
        "ln2b": jnp.zeros((L, 1, HIDDEN), jnp.float32),
    }


if __name__ == "__main__":
    B, S = 2, 8
    key = jax.random.PRNGKey(0)
    k_ids, _ = jax.random.split(key)
    input_ids = jax.random.randint(k_ids, (B, S), 0, VOCAB, dtype=jnp.int32)
    attention_mask = jnp.ones((B, S), dtype=jnp.int32)
    attention_mask = attention_mask.at[1, 6:].set(0)  # second sequence is padded

    params = make_params(seed=0)
    out = text_encoder_forward(params, input_ids, attention_mask)
    jax.block_until_ready(out)
    assert out.shape == (B, HIDDEN) and out.dtype == jnp.float32
    print("KERNEL_OK")
</pallas_src>

<mosaic_0001>
module attributes {stable_mosaic.version = 11 : i64} {
  func.func @kernel(%arg0: i32, %arg1: memref<1x8x1xi32, #tpu.memory_space<vmem>>, %arg2: memref<1x1x8xi32, #tpu.memory_space<vmem>>, %arg3: memref<100x32xf32, #tpu.memory_space<vmem>>, %arg4: memref<16x32xf32, #tpu.memory_space<vmem>>, %arg5: memref<1x32xf32, #tpu.memory_space<vmem>>, %arg6: memref<1x32xf32, #tpu.memory_space<vmem>>, %arg7: memref<2x32x96xf32, #tpu.memory_space<vmem>>, %arg8: memref<2x1x96xf32, #tpu.memory_space<vmem>>, %arg9: memref<2x32x32xf32, #tpu.memory_space<vmem>>, %arg10: memref<2x1x32xf32, #tpu.memory_space<vmem>>, %arg11: memref<2x1x32xf32, #tpu.memory_space<vmem>>, %arg12: memref<2x1x32xf32, #tpu.memory_space<vmem>>, %arg13: memref<2x32x64xf32, #tpu.memory_space<vmem>>, %arg14: memref<2x1x64xf32, #tpu.memory_space<vmem>>, %arg15: memref<2x64x32xf32, #tpu.memory_space<vmem>>, %arg16: memref<2x1x32xf32, #tpu.memory_space<vmem>>, %arg17: memref<2x1x32xf32, #tpu.memory_space<vmem>>, %arg18: memref<2x1x32xf32, #tpu.memory_space<vmem>>, %arg19: memref<1x1x32xf32, #tpu.memory_space<vmem>>, %arg20: memref<32x8xf32, #tpu.memory_space<vmem>>, %arg21: memref<8x32xf32, #tpu.memory_space<vmem>>) attributes {dimension_semantics = [#tpu.dimension_semantics<parallel>], iteration_bounds = array<i64: 2>, scalar_prefetch = 0 : i64, scratch_operands = 2 : i64, tpu.core_type = #tpu.core_type<tc>, window_params = [{transform_indices = @transform_0, window_bounds = array<i64: 1, 8, 1>}, {transform_indices = @transform_1, window_bounds = array<i64: 1, 1, 8>}, {pipeline_mode = #tpu.pipeline_mode<synchronous>, transform_indices = @transform_2, window_bounds = array<i64: 100, 32>}, {pipeline_mode = #tpu.pipeline_mode<synchronous>, transform_indices = @transform_3, window_bounds = array<i64: 16, 32>}, {pipeline_mode = #tpu.pipeline_mode<synchronous>, transform_indices = @transform_4, window_bounds = array<i64: 1, 32>}, {pipeline_mode = #tpu.pipeline_mode<synchronous>, transform_indices = @transform_5, window_bounds = array<i64: 1, 32>}, {pipeline_mode = #tpu.pipeline_mode<synchronous>, transform_indices = @transform_6, window_bounds = array<i64: 2, 32, 96>}, {pipeline_mode = #tpu.pipeline_mode<synchronous>, transform_indices = @transform_7, window_bounds = array<i64: 2, 1, 96>}, {pipeline_mode = #tpu.pipeline_mode<synchronous>, transform_indices = @transform_8, window_bounds = array<i64: 2, 32, 32>}, {pipeline_mode = #tpu.pipeline_mode<synchronous>, transform_indices = @transform_9, window_bounds = array<i64: 2, 1, 32>}, {pipeline_mode = #tpu.pipeline_mode<synchronous>, transform_indices = @transform_10, window_bounds = array<i64: 2, 1, 32>}, {pipeline_mode = #tpu.pipeline_mode<synchronous>, transform_indices = @transform_11, window_bounds = array<i64: 2, 1, 32>}, {pipeline_mode = #tpu.pipeline_mode<synchronous>, transform_indices = @transform_12, window_bounds = array<i64: 2, 32, 64>}, {pipeline_mode = #tpu.pipeline_mode<synchronous>, transform_indices = @transform_13, window_bounds = array<i64: 2, 1, 64>}, {pipeline_mode = #tpu.pipeline_mode<synchronous>, transform_indices = @transform_14, window_bounds = array<i64: 2, 64, 32>}, {pipeline_mode = #tpu.pipeline_mode<synchronous>, transform_indices = @transform_15, window_bounds = array<i64: 2, 1, 32>}, {pipeline_mode = #tpu.pipeline_mode<synchronous>, transform_indices = @transform_16, window_bounds = array<i64: 2, 1, 32>}, {pipeline_mode = #tpu.pipeline_mode<synchronous>, transform_indices = @transform_17, window_bounds = array<i64: 2, 1, 32>}, {transform_indices = @transform_18, window_bounds = array<i64: 1, 1, 32>}]} {
    %c0 = arith.constant 0 : index
    %c0_0 = arith.constant 0 : index
    %c0_1 = arith.constant 0 : index
    %0 = vector.load %arg1[%c0, %c0_0, %c0_1] : memref<1x8x1xi32, #tpu.memory_space<vmem>>, vector<1x8x1xi32>
    %1 = vector.shape_cast %0 : vector<1x8x1xi32> to vector<8x1xi32>
    %2 = tpu.iota {dimensions = array<i32: 1>} : vector<8x100xi32>
    %3 = vector.broadcast %1 : vector<8x1xi32> to vector<8x100xi32>
    %4 = arith.cmpi eq, %2, %3 : vector<8x100xi32>
    %5 = arith.extui %4 : vector<8x100xi1> to vector<8x100xi32>
    %6 = arith.sitofp %5 : vector<8x100xi32> to vector<8x100xf32>
    %c0_2 = arith.constant 0 : index
    %c0_3 = arith.constant 0 : index
    %7 = vector.load %arg3[%c0_2, %c0_3] : memref<100x32xf32, #tpu.memory_space<vmem>>, vector<100x32xf32>
    %cst = arith.constant dense<0.000000e+00> : vector<8x32xf32>
    %8 = tpu.matmul %6, %7, %cst {dimension_numbers = #tpu.dot_dimension_numbers<[1], [0], [0], [1], [0, 0, 1, 1], [], []>} : vector<8x100xf32>, vector<100x32xf32>, vector<8x32xf32> -> vector<8x32xf32>
    %c0_4 = arith.constant 0 : index
    %c0_5 = arith.constant 0 : index
    %9 = vector.load %arg4[%c0_4, %c0_5] : memref<16x32xf32, #tpu.memory_space<vmem>>, vector<8x32xf32>
    %10 = arith.addf %8, %9 : vector<8x32xf32>
    %c0_6 = arith.constant 0 : index
    %c0_7 = arith.constant 0 : index
    %11 = vector.load %arg5[%c0_6, %c0_7] : memref<1x32xf32, #tpu.memory_space<vmem>>, vector<1x32xf32>
    %c0_8 = arith.constant 0 : index
    %c0_9 = arith.constant 0 : index
    %12 = vector.load %arg6[%c0_8, %c0_9] : memref<1x32xf32, #tpu.memory_space<vmem>>, vector<1x32xf32>
    %cst_10 = arith.constant dense<0.000000e+00> : vector<8xf32>
    %13 = vector.multi_reduction <add>, %10, %cst_10 [1] : vector<8x32xf32> to vector<8xf32>
    %14 = vector.shape_cast %13 : vector<8xf32> to vector<8x1xf32>
    %cst_11 = arith.constant 3.200000e+01 : f32
    %15 = vector.broadcast %cst_11 : f32 to vector<8x1xf32>
    %16 = arith.divf %14, %15 : vector<8x1xf32>
    %17 = vector.broadcast %16 : vector<8x1xf32> to vector<8x32xf32>
    %18 = arith.subf %10, %17 : vector<8x32xf32>
    %19 = arith.mulf %18, %18 : vector<8x32xf32>
    %cst_12 = arith.constant dense<0.000000e+00> : vector<8xf32>
    %20 = vector.multi_reduction <add>, %19, %cst_12 [1] : vector<8x32xf32> to vector<8xf32>
    %21 = vector.shape_cast %20 : vector<8xf32> to vector<8x1xf32>
    %cst_13 = arith.constant 3.200000e+01 : f32
    %22 = vector.broadcast %cst_13 : f32 to vector<8x1xf32>
    %23 = arith.divf %21, %22 : vector<8x1xf32>
    %24 = vector.broadcast %16 : vector<8x1xf32> to vector<8x32xf32>
    %25 = arith.subf %10, %24 : vector<8x32xf32>
    %cst_14 = arith.constant 9.99999996E-13 : f32
    %26 = vector.broadcast %cst_14 : f32 to vector<8x1xf32>
    %27 = arith.addf %23, %26 : vector<8x1xf32>
    %28 = math.rsqrt %27 : vector<8x1xf32>
    %29 = vector.broadcast %28 : vector<8x1xf32> to vector<8x32xf32>
    %30 = arith.mulf %25, %29 : vector<8x32xf32>
    %31 = vector.broadcast %11 : vector<1x32xf32> to vector<8x32xf32>
    %32 = arith.mulf %30, %31 : vector<8x32xf32>
    %33 = vector.broadcast %12 : vector<1x32xf32> to vector<8x32xf32>
    %34 = arith.addf %32, %33 : vector<8x32xf32>
    %c0_15 = arith.constant 0 : index
    %c0_16 = arith.constant 0 : index
    %c0_17 = arith.constant 0 : index
    %35 = vector.load %arg2[%c0_15, %c0_16, %c0_17] : memref<1x1x8xi32, #tpu.memory_space<vmem>>, vector<1x1x8xi32>
    %36 = vector.shape_cast %35 : vector<1x1x8xi32> to vector<1x8xi32>
    %c0_i32 = arith.constant 0 : i32
    %37 = vector.broadcast %c0_i32 : i32 to vector<1x8xi32>
    %38 = arith.cmpi sgt, %36, %37 : vector<1x8xi32>
    %cst_18 = arith.constant 0.000000e+00 : f32
    %cst_19 = arith.constant -1.000000e+30 : f32
    %39 = vector.broadcast %cst_18 : f32 to vector<1x8xf32>
    %40 = vector.broadcast %cst_19 : f32 to vector<1x8xf32>
    %41 = arith.select %38, %39, %40 : vector<1x8xi1>, vector<1x8xf32>
    %c0_20 = arith.constant 0 : index
    %c0_21 = arith.constant 0 : index
    %c0_22 = arith.constant 0 : index
    %42 = vector.load %arg7[%c0_20, %c0_21, %c0_22] : memref<2x32x96xf32, #tpu.memory_space<vmem>>, vector<1x32x96xf32>
    %43 = vector.shape_cast %42 : vector<1x32x96xf32> to vector<32x96xf32>
    %cst_23 = arith.constant dense<0.000000e+00> : vector<8x96xf32>
    %44 = tpu.matmul %34, %43, %cst_23 {dimension_numbers = #tpu.dot_dimension_numbers<[1], [0], [0], [1], [0, 0, 1, 1], [], []>} : vector<8x32xf32>, vector<32x96xf32>, vector<8x96xf32> -> vector<8x96xf32>
    %c0_24 = arith.constant 0 : index
    %c0_25 = arith.constant 0 : index
    %c0_26 = arith.constant 0 : index
    %45 = vector.load %arg8[%c0_24, %c0_25, %c0_26] : memref<2x1x96xf32, #tpu.memory_space<vmem>>, vector<1x1x96xf32>
    %46 = vector.shape_cast %45 : vector<1x1x96xf32> to vector<1x96xf32>
    %47 = vector.broadcast %46 : vector<1x96xf32> to vector<8x96xf32>
    %48 = arith.addf %44, %47 : vector<8x96xf32>
    %49 = vector.extract_strided_slice %48 {offsets = [0, 0], sizes = [8, 8], strides = [1, 1]} : vector<8x96xf32> to vector<8x8xf32>
    %50 = vector.extract_strided_slice %48 {offsets = [0, 32], sizes = [8, 8], strides = [1, 1]} : vector<8x96xf32> to vector<8x8xf32>
    %cst_27 = arith.constant dense<0.000000e+00> : vector<8x8xf32>
    %51 = tpu.matmul %49, %50, %cst_27 {dimension_numbers = #tpu.dot_dimension_numbers<[1], [1], [0], [0], [0, 0, 1, 0], [], []>} : vector<8x8xf32>, vector<8x8xf32>, vector<8x8xf32> -> vector<8x8xf32>
    %cst_28 = arith.constant 0.353553385 : f32
    %52 = vector.broadcast %cst_28 : f32 to vector<8x8xf32>
    %53 = arith.mulf %51, %52 : vector<8x8xf32>
    %54 = vector.broadcast %41 : vector<1x8xf32> to vector<8x8xf32>
    %55 = arith.addf %53, %54 : vector<8x8xf32>
    %c0_29 = arith.constant 0 : index
    %c0_30 = arith.constant 0 : index
    %56 = vector.load %arg20[%c0_29, %c0_30] : memref<32x8xf32, #tpu.memory_space<vmem>>, vector<8x8xf32>
    tpu.vector_store %arg20[%c0_29, %c0_30], %55 {strides = array<i32>} : memref<32x8xf32, #tpu.memory_space<vmem>>, vector<8x8xf32>,
    %57 = vector.extract_strided_slice %48 {offsets = [0, 8], sizes = [8, 8], strides = [1, 1]} : vector<8x96xf32> to vector<8x8xf32>
    %58 = vector.extract_strided_slice %48 {offsets = [0, 40], sizes = [8, 8], strides = [1, 1]} : vector<8x96xf32> to vector<8x8xf32>
    %cst_31 = arith.constant dense<0.000000e+00> : vector<8x8xf32>
    %59 = tpu.matmul %57, %58, %cst_31 {dimension_numbers = #tpu.dot_dimension_numbers<[1], [1], [0], [0], [0, 0, 1, 0], [], []>} : vector<8x8xf32>, vector<8x8xf32>, vector<8x8xf32> -> vector<8x8xf32>
    %cst_32 = arith.constant 0.353553385 : f32
    %60 = vector.broadcast %cst_32 : f32 to vector<8x8xf32>
    %61 = arith.mulf %59, %60 : vector<8x8xf32>
    %62 = vector.broadcast %41 : vector<1x8xf32> to vector<8x8xf32>
    %63 = arith.addf %61, %62 : vector<8x8xf32>
    %c8 = arith.constant 8 : index
    %c0_33 = arith.constant 0 : index
    %64 = vector.load %arg20[%c8, %c0_33] : memref<32x8xf32, #tpu.memory_space<vmem>>, vector<8x8xf32>
    tpu.vector_store %arg20[%c8, %c0_33], %63 {strides = array<i32>} : memref<32x8xf32, #tpu.memory_space<vmem>>, vector<8x8xf32>,
    %65 = vector.extract_strided_slice %48 {offsets = [0, 16], sizes = [8, 8], strides = [1, 1]} : vector<8x96xf32> to vector<8x8xf32>
    %66 = vector.extract_strided_slice %48 {offsets = [0, 48], sizes = [8, 8], strides = [1, 1]} : vector<8x96xf32> to vector<8x8xf32>
    %cst_34 = arith.constant dense<0.000000e+00> : vector<8x8xf32>
    %67 = tpu.matmul %65, %66, %cst_34 {dimension_numbers = #tpu.dot_dimension_numbers<[1], [1], [0], [0], [0, 0, 1, 0], [], []>} : vector<8x8xf32>, vector<8x8xf32>, vector<8x8xf32> -> vector<8x8xf32>
    %cst_35 = arith.constant 0.353553385 : f32
    %68 = vector.broadcast %cst_35 : f32 to vector<8x8xf32>
    %69 = arith.mulf %67, %68 : vector<8x8xf32>
    %70 = vector.broadcast %41 : vector<1x8xf32> to vector<8x8xf32>
    %71 = arith.addf %69, %70 : vector<8x8xf32>
    %c16 = arith.constant 16 : index
    %c0_36 = arith.constant 0 : index
    %72 = vector.load %arg20[%c16, %c0_36] : memref<32x8xf32, #tpu.memory_space<vmem>>, vector<8x8xf32>
    tpu.vector_store %arg20[%c16, %c0_36], %71 {strides = array<i32>} : memref<32x8xf32, #tpu.memory_space<vmem>>, vector<8x8xf32>,
    %73 = vector.extract_strided_slice %48 {offsets = [0, 24], sizes = [8, 8], strides = [1, 1]} : vector<8x96xf32> to vector<8x8xf32>
    %74 = vector.extract_strided_slice %48 {offsets = [0, 56], sizes = [8, 8], strides = [1, 1]} : vector<8x96xf32> to vector<8x8xf32>
    %cst_37 = arith.constant dense<0.000000e+00> : vector<8x8xf32>
    %75 = tpu.matmul %73, %74, %cst_37 {dimension_numbers = #tpu.dot_dimension_numbers<[1], [1], [0], [0], [0, 0, 1, 0], [], []>} : vector<8x8xf32>, vector<8x8xf32>, vector<8x8xf32> -> vector<8x8xf32>
    %cst_38 = arith.constant 0.353553385 : f32
    %76 = vector.broadcast %cst_38 : f32 to vector<8x8xf32>
    %77 = arith.mulf %75, %76 : vector<8x8xf32>
    %78 = vector.broadcast %41 : vector<1x8xf32> to vector<8x8xf32>
    %79 = arith.addf %77, %78 : vector<8x8xf32>
    %c24 = arith.constant 24 : index
    %c0_39 = arith.constant 0 : index
    %80 = vector.load %arg20[%c24, %c0_39] : memref<32x8xf32, #tpu.memory_space<vmem>>, vector<8x8xf32>
    tpu.vector_store %arg20[%c24, %c0_39], %79 {strides = array<i32>} : memref<32x8xf32, #tpu.memory_space<vmem>>, vector<8x8xf32>,
    %c0_40 = arith.constant 0 : index
    %c0_41 = arith.constant 0 : index
    %81 = vector.load %arg20[%c0_40, %c0_41] : memref<32x8xf32, #tpu.memory_space<vmem>>, vector<32x8xf32>
    %cst_42 = arith.constant dense<0xFF800000> : vector<32xf32>
    %82 = vector.multi_reduction <maximumf>, %81, %cst_42 [1] : vector<32x8xf32> to vector<32xf32>
    %83 = vector.shape_cast %82 : vector<32xf32> to vector<32x1xf32>
    %84 = vector.broadcast %83 : vector<32x1xf32> to vector<32x8xf32>
    %85 = arith.subf %81, %84 : vector<32x8xf32>
    %86 = math.exp %85 : vector<32x8xf32>
    %cst_43 = arith.constant dense<0.000000e+00> : vector<32xf32>
    %87 = vector.multi_reduction <add>, %86, %cst_43 [1] : vector<32x8xf32> to vector<32xf32>
    %88 = vector.shape_cast %87 : vector<32xf32> to vector<32x1xf32>
    %89 = tpu.reciprocal %88 {approx = true} : vector<32x1xf32> -> vector<32x1xf32>
    %90 = vector.broadcast %89 : vector<32x1xf32> to vector<32x8xf32>
    %91 = arith.mulf %86, %90 : vector<32x8xf32>
    %92 = vector.extract_strided_slice %48 {offsets = [0, 64], sizes = [8, 8], strides = [1, 1]} : vector<8x96xf32> to vector<8x8xf32>
    %93 = vector.extract_strided_slice %91 {offsets = [0, 0], sizes = [8, 8], strides = [1, 1]} : vector<32x8xf32> to vector<8x8xf32>
    %cst_44 = arith.constant dense<0.000000e+00> : vector<8x8xf32>
    %94 = tpu.matmul %93, %92, %cst_44 {dimension_numbers = #tpu.dot_dimension_numbers<[1], [0], [0], [1], [0, 0, 1, 1], [], []>} : vector<8x8xf32>, vector<8x8xf32>, vector<8x8xf32> -> vector<8x8xf32>
    %c0_45 = arith.constant 0 : index
    %c0_46 = arith.constant 0 : index
    %95 = vector.load %arg21[%c0_45, %c0_46] : memref<8x32xf32, #tpu.memory_space<vmem>>, vector<8x8xf32>
    tpu.vector_store %arg21[%c0_45, %c0_46], %94 {strides = array<i32>} : memref<8x32xf32, #tpu.memory_space<vmem>>, vector<8x8xf32>,
    %96 = vector.extract_strided_slice %48 {offsets = [0, 72], sizes = [8, 8], strides = [1, 1]} : vector<8x96xf32> to vector<8x8xf32>
    %97 = vector.extract_strided_slice %91 {offsets = [8, 0], sizes = [8, 8], strides = [1, 1]} : vector<32x8xf32> to vector<8x8xf32>
    %cst_47 = arith.constant dense<0.000000e+00> : vector<8x8xf32>
    %98 = tpu.matmul %97, %96, %cst_47 {dimension_numbers = #tpu.dot_dimension_numbers<[1], [0], [0], [1], [0, 0, 1, 1], [], []>} : vector<8x8xf32>, vector<8x8xf32>, vector<8x8xf32> -> vector<8x8xf32>
    %c0_48 = arith.constant 0 : index
    %c8_49 = arith.constant 8 : index
    %99 = vector.load %arg21[%c0_48, %c8_49] : memref<8x32xf32, #tpu.memory_space<vmem>>, vector<8x8xf32>
    tpu.vector_store %arg21[%c0_48, %c8_49], %98 {strides = array<i32>} : memref<8x32xf32, #tpu.memory_space<vmem>>, vector<8x8xf32>,
    %100 = vector.extract_strided_slice %48 {offsets = [0, 80], sizes = [8, 8], strides = [1, 1]} : vector<8x96xf32> to vector<8x8xf32>
    %101 = vector.extract_strided_slice %91 {offsets = [16, 0], sizes = [8, 8], strides = [1, 1]} : vector<32x8xf32> to vector<8x8xf32>
    %cst_50 = arith.constant dense<0.000000e+00> : vector<8x8xf32>
    %102 = tpu.matmul %101, %100, %cst_50 {dimension_numbers = #tpu.dot_dimension_numbers<[1], [0], [0], [1], [0, 0, 1, 1], [], []>} : vector<8x8xf32>, vector<8x8xf32>, vector<8x8xf32> -> vector<8x8xf32>
    %c0_51 = arith.constant 0 : index
    %c16_52 = arith.constant 16 : index
    %103 = vector.load %arg21[%c0_51, %c16_52] : memref<8x32xf32, #tpu.memory_space<vmem>>, vector<8x8xf32>
    tpu.vector_store %arg21[%c0_51, %c16_52], %102 {strides = array<i32>} : memref<8x32xf32, #tpu.memory_space<vmem>>, vector<8x8xf32>,
    %104 = vector.extract_strided_slice %48 {offsets = [0, 88], sizes = [8, 8], strides = [1, 1]} : vector<8x96xf32> to vector<8x8xf32>
    %105 = vector.extract_strided_slice %91 {offsets = [24, 0], sizes = [8, 8], strides = [1, 1]} : vector<32x8xf32> to vector<8x8xf32>
    %cst_53 = arith.constant dense<0.000000e+00> : vector<8x8xf32>
    %106 = tpu.matmul %105, %104, %cst_53 {dimension_numbers = #tpu.dot_dimension_numbers<[1], [0], [0], [1], [0, 0, 1, 1], [], []>} : vector<8x8xf32>, vector<8x8xf32>, vector<8x8xf32> -> vector<8x8xf32>
    %c0_54 = arith.constant 0 : index
    %c24_55 = arith.constant 24 : index
    %107 = vector.load %arg21[%c0_54, %c24_55] : memref<8x32xf32, #tpu.memory_space<vmem>>, vector<8x8xf32>
    tpu.vector_store %arg21[%c0_54, %c24_55], %106 {strides = array<i32>} : memref<8x32xf32, #tpu.memory_space<vmem>>, vector<8x8xf32>,
    %c0_56 = arith.constant 0 : index
    %c0_57 = arith.constant 0 : index
    %108 = vector.load %arg21[%c0_56, %c0_57] : memref<8x32xf32, #tpu.memory_space<vmem>>, vector<8x32xf32>
    %c0_58 = arith.constant 0 : index
    %c0_59 = arith.constant 0 : index
    %c0_60 = arith.constant 0 : index
    %109 = vector.load %arg9[%c0_58, %c0_59, %c0_60] : memref<2x32x32xf32, #tpu.memory_space<vmem>>, vector<1x32x32xf32>
    %110 = vector.shape_cast %109 : vector<1x32x32xf32> to vector<32x32xf32>
    %cst_61 = arith.constant dense<0.000000e+00> : vector<8x32xf32>
    %111 = tpu.matmul %108, %110, %cst_61 {dimension_numbers = #tpu.dot_dimension_numbers<[1], [0], [0], [1], [0, 0, 1, 1], [], []>} : vector<8x32xf32>, vector<32x32xf32>, vector<8x32xf32> -> vector<8x32xf32>
    %c0_62 = arith.constant 0 : index
    %c0_63 = arith.constant 0 : index
    %c0_64 = arith.constant 0 : index
    %112 = vector.load %arg10[%c0_62, %c0_63, %c0_64] : memref<2x1x32xf32, #tpu.memory_space<vmem>>, vector<1x1x32xf32>
    %113 = vector.shape_cast %112 : vector<1x1x32xf32> to vector<1x32xf32>
    %114 = vector.broadcast %113 : vector<1x32xf32> to vector<8x32xf32>
    %115 = arith.addf %111, %114 : vector<8x32xf32>
    %116 = arith.addf %115, %34 : vector<8x32xf32>
    %c0_65 = arith.constant 0 : index
    %c0_66 = arith.constant 0 : index
    %c0_67 = arith.constant 0 : index
    %117 = vector.load %arg11[%c0_65, %c0_66, %c0_67] : memref<2x1x32xf32, #tpu.memory_space<vmem>>, vector<1x1x32xf32>
    %118 = vector.shape_cast %117 : vector<1x1x32xf32> to vector<1x32xf32>
    %c0_68 = arith.constant 0 : index
    %c0_69 = arith.constant 0 : index
    %c0_70 = arith.constant 0 : index
    %119 = vector.load %arg12[%c0_68, %c0_69, %c0_70] : memref<2x1x32xf32, #tpu.memory_space<vmem>>, vector<1x1x32xf32>
    %120 = vector.shape_cast %119 : vector<1x1x32xf32> to vector<1x32xf32>
    %cst_71 = arith.constant dense<0.000000e+00> : vector<8xf32>
    %121 = vector.multi_reduction <add>, %116, %cst_71 [1] : vector<8x32xf32> to vector<8xf32>
    %122 = vector.shape_cast %121 : vector<8xf32> to vector<8x1xf32>
    %cst_72 = arith.constant 3.200000e+01 : f32
    %123 = vector.broadcast %cst_72 : f32 to vector<8x1xf32>
    %124 = arith.divf %122, %123 : vector<8x1xf32>
    %125 = vector.broadcast %124 : vector<8x1xf32> to vector<8x32xf32>
    %126 = arith.subf %116, %125 : vector<8x32xf32>
    %127 = arith.mulf %126, %126 : vector<8x32xf32>
    %cst_73 = arith.constant dense<0.000000e+00> : vector<8xf32>
    %128 = vector.multi_reduction <add>, %127, %cst_73 [1] : vector<8x32xf32> to vector<8xf32>
    %129 = vector.shape_cast %128 : vector<8xf32> to vector<8x1xf32>
    %cst_74 = arith.constant 3.200000e+01 : f32
    %130 = vector.broadcast %cst_74 : f32 to vector<8x1xf32>
    %131 = arith.divf %129, %130 : vector<8x1xf32>
    %132 = vector.broadcast %124 : vector<8x1xf32> to vector<8x32xf32>
    %133 = arith.subf %116, %132 : vector<8x32xf32>
    %cst_75 = arith.constant 9.99999996E-13 : f32
    %134 = vector.broadcast %cst_75 : f32 to vector<8x1xf32>
    %135 = arith.addf %131, %134 : vector<8x1xf32>
    %136 = math.rsqrt %135 : vector<8x1xf32>
    %137 = vector.broadcast %136 : vector<8x1xf32> to vector<8x32xf32>
    %138 = arith.mulf %133, %137 : vector<8x32xf32>
    %139 = vector.broadcast %118 : vector<1x32xf32> to vector<8x32xf32>
    %140 = arith.mulf %138, %139 : vector<8x32xf32>
    %141 = vector.broadcast %120 : vector<1x32xf32> to vector<8x32xf32>
    %142 = arith.addf %140, %141 : vector<8x32xf32>
    %c0_76 = arith.constant 0 : index
    %c0_77 = arith.constant 0 : index
    %c0_78 = arith.constant 0 : index
    %143 = vector.load %arg13[%c0_76, %c0_77, %c0_78] : memref<2x32x64xf32, #tpu.memory_space<vmem>>, vector<1x32x64xf32>
    %144 = vector.shape_cast %143 : vector<1x32x64xf32> to vector<32x64xf32>
    %cst_79 = arith.constant dense<0.000000e+00> : vector<8x64xf32>
    %145 = tpu.matmul %142, %144, %cst_79 {dimension_numbers = #tpu.dot_dimension_numbers<[1], [0], [0], [1], [0, 0, 1, 1], [], []>} : vector<8x32xf32>, vector<32x64xf32>, vector<8x64xf32> -> vector<8x64xf32>
    %c0_80 = arith.constant 0 : index
    %c0_81 = arith.constant 0 : index
    %c0_82 = arith.constant 0 : index
    %146 = vector.load %arg14[%c0_80, %c0_81, %c0_82] : memref<2x1x64xf32, #tpu.memory_space<vmem>>, vector<1x1x64xf32>
    %147 = vector.shape_cast %146 : vector<1x1x64xf32> to vector<1x64xf32>
    %148 = vector.broadcast %147 : vector<1x64xf32> to vector<8x64xf32>
    %149 = arith.addf %145, %148 : vector<8x64xf32>
    %150 = arith.mulf %149, %149 : vector<8x64xf32>
    %151 = arith.mulf %149, %150 : vector<8x64xf32>
    %cst_83 = arith.constant 4.471500e-02 : f32
    %152 = vector.broadcast %cst_83 : f32 to vector<8x64xf32>
    %153 = arith.mulf %152, %151 : vector<8x64xf32>
    %154 = arith.addf %149, %153 : vector<8x64xf32>
    %cst_84 = arith.constant 0.797884583 : f32
    %155 = vector.broadcast %cst_84 : f32 to vector<8x64xf32>
    %156 = arith.mulf %155, %154 : vector<8x64xf32>
    %157 = math.tanh %156 : vector<8x64xf32>
    %cst_85 = arith.constant 1.000000e+00 : f32
    %158 = vector.broadcast %cst_85 : f32 to vector<8x64xf32>
    %159 = arith.addf %158, %157 : vector<8x64xf32>
    %cst_86 = arith.constant 5.000000e-01 : f32
    %160 = vector.broadcast %cst_86 : f32 to vector<8x64xf32>
    %161 = arith.mulf %160, %159 : vector<8x64xf32>
    %162 = arith.mulf %149, %161 : vector<8x64xf32>
    %c0_87 = arith.constant 0 : index
    %c0_88 = arith.constant 0 : index
    %c0_89 = arith.constant 0 : index
    %163 = vector.load %arg15[%c0_87, %c0_88, %c0_89] : memref<2x64x32xf32, #tpu.memory_space<vmem>>, vector<1x64x32xf32>
    %164 = vector.shape_cast %163 : vector<1x64x32xf32> to vector<64x32xf32>
    %cst_90 = arith.constant dense<0.000000e+00> : vector<8x32xf32>
    %165 = tpu.matmul %162, %164, %cst_90 {dimension_numbers = #tpu.dot_dimension_numbers<[1], [0], [0], [1], [0, 0, 1, 1], [], []>} : vector<8x64xf32>, vector<64x32xf32>, vector<8x32xf32> -> vector<8x32xf32>
    %c0_91 = arith.constant 0 : index
    %c0_92 = arith.constant 0 : index
    %c0_93 = arith.constant 0 : index
    %166 = vector.load %arg16[%c0_91, %c0_92, %c0_93] : memref<2x1x32xf32, #tpu.memory_space<vmem>>, vector<1x1x32xf32>
    %167 = vector.shape_cast %166 : vector<1x1x32xf32> to vector<1x32xf32>
    %168 = vector.broadcast %167 : vector<1x32xf32> to vector<8x32xf32>
    %169 = arith.addf %165, %168 : vector<8x32xf32>
    %170 = arith.addf %169, %142 : vector<8x32xf32>
    %c0_94 = arith.constant 0 : index
    %c0_95 = arith.constant 0 : index
    %c0_96 = arith.constant 0 : index
    %171 = vector.load %arg17[%c0_94, %c0_95, %c0_96] : memref<2x1x32xf32, #tpu.memory_space<vmem>>, vector<1x1x32xf32>
    %172 = vector.shape_cast %171 : vector<1x1x32xf32> to vector<1x32xf32>
    %c0_97 = arith.constant 0 : index
    %c0_98 = arith.constant 0 : index
    %c0_99 = arith.constant 0 : index
    %173 = vector.load %arg18[%c0_97, %c0_98, %c0_99] : memref<2x1x32xf32, #tpu.memory_space<vmem>>, vector<1x1x32xf32>
    %174 = vector.shape_cast %173 : vector<1x1x32xf32> to vector<1x32xf32>
    %cst_100 = arith.constant dense<0.000000e+00> : vector<8xf32>
    %175 = vector.multi_reduction <add>, %170, %cst_100 [1] : vector<8x32xf32> to vector<8xf32>
    %176 = vector.shape_cast %175 : vector<8xf32> to vector<8x1xf32>
    %cst_101 = arith.constant 3.200000e+01 : f32
    %177 = vector.broadcast %cst_101 : f32 to vector<8x1xf32>
    %178 = arith.divf %176, %177 : vector<8x1xf32>
    %179 = vector.broadcast %178 : vector<8x1xf32> to vector<8x32xf32>
    %180 = arith.subf %170, %179 : vector<8x32xf32>
    %181 = arith.mulf %180, %180 : vector<8x32xf32>
    %cst_102 = arith.constant dense<0.000000e+00> : vector<8xf32>
    %182 = vector.multi_reduction <add>, %181, %cst_102 [1] : vector<8x32xf32> to vector<8xf32>
    %183 = vector.shape_cast %182 : vector<8xf32> to vector<8x1xf32>
    %cst_103 = arith.constant 3.200000e+01 : f32
    %184 = vector.broadcast %cst_103 : f32 to vector<8x1xf32>
    %185 = arith.divf %183, %184 : vector<8x1xf32>
    %186 = vector.broadcast %178 : vector<8x1xf32> to vector<8x32xf32>
    %187 = arith.subf %170, %186 : vector<8x32xf32>
    %cst_104 = arith.constant 9.99999996E-13 : f32
    %188 = vector.broadcast %cst_104 : f32 to vector<8x1xf32>
    %189 = arith.addf %185, %188 : vector<8x1xf32>
    %190 = math.rsqrt %189 : vector<8x1xf32>
    %191 = vector.broadcast %190 : vector<8x1xf32> to vector<8x32xf32>
    %192 = arith.mulf %187, %191 : vector<8x32xf32>
    %193 = vector.broadcast %172 : vector<1x32xf32> to vector<8x32xf32>
    %194 = arith.mulf %192, %193 : vector<8x32xf32>
    %195 = vector.broadcast %174 : vector<1x32xf32> to vector<8x32xf32>
    %196 = arith.addf %194, %195 : vector<8x32xf32>
    %c1 = arith.constant 1 : index
    %c0_105 = arith.constant 0 : index
    %c0_106 = arith.constant 0 : index
    %197 = vector.load %arg7[%c1, %c0_105, %c0_106] : memref<2x32x96xf32, #tpu.memory_space<vmem>>, vector<1x32x96xf32>
    %198 = vector.shape_cast %197 : vector<1x32x96xf32> to vector<32x96xf32>
    %cst_107 = arith.constant dense<0.000000e+00> : vector<8x96xf32>
    %199 = tpu.matmul %196, %198, %cst_107 {dimension_numbers = #tpu.dot_dimension_numbers<[1], [0], [0], [1], [0, 0, 1, 1], [], []>} : vector<8x32xf32>, vector<32x96xf32>, vector<8x96xf32> -> vector<8x96xf32>
    %c1_108 = arith.constant 1 : index
    %c0_109 = arith.constant 0 : index
    %c0_110 = arith.constant 0 : index
    %200 = vector.load %arg8[%c1_108, %c0_109, %c0_110] : memref<2x1x96xf32, #tpu.memory_space<vmem>>, vector<1x1x96xf32>
    %201 = vector.shape_cast %200 : vector<1x1x96xf32> to vector<1x96xf32>
    %202 = vector.broadcast %201 : vector<1x96xf32> to vector<8x96xf32>
    %203 = arith.addf %199, %202 : vector<8x96xf32>
    %204 = vector.extract_strided_slice %203 {offsets = [0, 0], sizes = [1, 8], strides = [1, 1]} : vector<8x96xf32> to vector<1x8xf32>
    %205 = vector.extract_strided_slice %203 {offsets = [0, 32], sizes = [8, 8], strides = [1, 1]} : vector<8x96xf32> to vector<8x8xf32>
    %cst_111 = arith.constant dense<0.000000e+00> : vector<1x8xf32>
    %206 = tpu.matmul %204, %205, %cst_111 {dimension_numbers = #tpu.dot_dimension_numbers<[1], [1], [0], [0], [0, 0, 1, 0], [], []>} : vector<1x8xf32>, vector<8x8xf32>, vector<1x8xf32> -> vector<1x8xf32>
    %cst_112 = arith.constant 0.353553385 : f32
    %207 = vector.broadcast %cst_112 : f32 to vector<1x8xf32>
    %208 = arith.mulf %206, %207 : vector<1x8xf32>
    %209 = arith.addf %208, %41 : vector<1x8xf32>
    %c0_113 = arith.constant 0 : index
    %c0_114 = arith.constant 0 : index
    %210 = vector.load %arg20[%c0_113, %c0_114] : memref<32x8xf32, #tpu.memory_space<vmem>>, vector<1x8xf32>
    tpu.vector_store %arg20[%c0_113, %c0_114], %209 {strides = array<i32>} : memref<32x8xf32, #tpu.memory_space<vmem>>, vector<1x8xf32>,
    %211 = vector.extract_strided_slice %203 {offsets = [0, 8], sizes = [1, 8], strides = [1, 1]} : vector<8x96xf32> to vector<1x8xf32>
    %212 = vector.extract_strided_slice %203 {offsets = [0, 40], sizes = [8, 8], strides = [1, 1]} : vector<8x96xf32> to vector<8x8xf32>
    %cst_115 = arith.constant dense<0.000000e+00> : vector<1x8xf32>
    %213 = tpu.matmul %211, %212, %cst_115 {dimension_numbers = #tpu.dot_dimension_numbers<[1], [1], [0], [0], [0, 0, 1, 0], [], []>} : vector<1x8xf32>, vector<8x8xf32>, vector<1x8xf32> -> vector<1x8xf32>
    %cst_116 = arith.constant 0.353553385 : f32
    %214 = vector.broadcast %cst_116 : f32 to vector<1x8xf32>
    %215 = arith.mulf %213, %214 : vector<1x8xf32>
    %216 = arith.addf %215, %41 : vector<1x8xf32>
    %c1_117 = arith.constant 1 : index
    %c0_118 = arith.constant 0 : index
    %217 = vector.load %arg20[%c1_117, %c0_118] : memref<32x8xf32, #tpu.memory_space<vmem>>, vector<1x8xf32>
    tpu.vector_store %arg20[%c1_117, %c0_118], %216 {strides = array<i32>} : memref<32x8xf32, #tpu.memory_space<vmem>>, vector<1x8xf32>,
    %218 = vector.extract_strided_slice %203 {offsets = [0, 16], sizes = [1, 8], strides = [1, 1]} : vector<8x96xf32> to vector<1x8xf32>
    %219 = vector.extract_strided_slice %203 {offsets = [0, 48], sizes = [8, 8], strides = [1, 1]} : vector<8x96xf32> to vector<8x8xf32>
    %cst_119 = arith.constant dense<0.000000e+00> : vector<1x8xf32>
    %220 = tpu.matmul %218, %219, %cst_119 {dimension_numbers = #tpu.dot_dimension_numbers<[1], [1], [0], [0], [0, 0, 1, 0], [], []>} : vector<1x8xf32>, vector<8x8xf32>, vector<1x8xf32> -> vector<1x8xf32>
    %cst_120 = arith.constant 0.353553385 : f32
    %221 = vector.broadcast %cst_120 : f32 to vector<1x8xf32>
    %222 = arith.mulf %220, %221 : vector<1x8xf32>
    %223 = arith.addf %222, %41 : vector<1x8xf32>
    %c2 = arith.constant 2 : index
    %c0_121 = arith.constant 0 : index
    %224 = vector.load %arg20[%c2, %c0_121] : memref<32x8xf32, #tpu.memory_space<vmem>>, vector<1x8xf32>
    tpu.vector_store %arg20[%c2, %c0_121], %223 {strides = array<i32>} : memref<32x8xf32, #tpu.memory_space<vmem>>, vector<1x8xf32>,
    %225 = vector.extract_strided_slice %203 {offsets = [0, 24], sizes = [1, 8], strides = [1, 1]} : vector<8x96xf32> to vector<1x8xf32>
    %226 = vector.extract_strided_slice %203 {offsets = [0, 56], sizes = [8, 8], strides = [1, 1]} : vector<8x96xf32> to vector<8x8xf32>
    %cst_122 = arith.constant dense<0.000000e+00> : vector<1x8xf32>
    %227 = tpu.matmul %225, %226, %cst_122 {dimension_numbers = #tpu.dot_dimension_numbers<[1], [1], [0], [0], [0, 0, 1, 0], [], []>} : vector<1x8xf32>, vector<8x8xf32>, vector<1x8xf32> -> vector<1x8xf32>
    %cst_123 = arith.constant 0.353553385 : f32
    %228 = vector.broadcast %cst_123 : f32 to vector<1x8xf32>
    %229 = arith.mulf %227, %228 : vector<1x8xf32>
    %230 = arith.addf %229, %41 : vector<1x8xf32>
    %c3 = arith.constant 3 : index
    %c0_124 = arith.constant 0 : index
    %231 = vector.load %arg20[%c3, %c0_124] : memref<32x8xf32, #tpu.memory_space<vmem>>, vector<1x8xf32>
    tpu.vector_store %arg20[%c3, %c0_124], %230 {strides = array<i32>} : memref<32x8xf32, #tpu.memory_space<vmem>>, vector<1x8xf32>,
    %c0_125 = arith.constant 0 : index
    %c0_126 = arith.constant 0 : index
    %232 = vector.load %arg20[%c0_125, %c0_126] : memref<32x8xf32, #tpu.memory_space<vmem>>, vector<4x8xf32>
    %cst_127 = arith.constant dense<0xFF800000> : vector<4xf32>
    %233 = vector.multi_reduction <maximumf>, %232, %cst_127 [1] : vector<4x8xf32> to vector<4xf32>
    %234 = vector.shape_cast %233 : vector<4xf32> to vector<4x1xf32>
    %235 = vector.broadcast %234 : vector<4x1xf32> to vector<4x8xf32>
    %236 = arith.subf %232, %235 : vector<4x8xf32>
    %237 = math.exp %236 : vector<4x8xf32>
    %cst_128 = arith.constant dense<0.000000e+00> : vector<4xf32>
    %238 = vector.multi_reduction <add>, %237, %cst_128 [1] : vector<4x8xf32> to vector<4xf32>
    %239 = vector.shape_cast %238 : vector<4xf32> to vector<4x1xf32>
    %240 = tpu.reciprocal %239 {approx = true} : vector<4x1xf32> -> vector<4x1xf32>
    %241 = vector.broadcast %240 : vector<4x1xf32> to vector<4x8xf32>
    %242 = arith.mulf %237, %241 : vector<4x8xf32>
    %243 = vector.extract_strided_slice %203 {offsets = [0, 64], sizes = [8, 8], strides = [1, 1]} : vector<8x96xf32> to vector<8x8xf32>
    %244 = vector.extract_strided_slice %242 {offsets = [0, 0], sizes = [1, 8], strides = [1, 1]} : vector<4x8xf32> to vector<1x8xf32>
    %cst_129 = arith.constant dense<0.000000e+00> : vector<1x8xf32>
    %245 = tpu.matmul %244, %243, %cst_129 {dimension_numbers = #tpu.dot_dimension_numbers<[1], [0], [0], [1], [0, 0, 1, 1], [], []>} : vector<1x8xf32>, vector<8x8xf32>, vector<1x8xf32> -> vector<1x8xf32>
    %c0_130 = arith.constant 0 : index
    %c0_131 = arith.constant 0 : index
    %246 = vector.load %arg21[%c0_130, %c0_131] : memref<8x32xf32, #tpu.memory_space<vmem>>, vector<1x8xf32>
    tpu.vector_store %arg21[%c0_130, %c0_131], %245 {strides = array<i32>} : memref<8x32xf32, #tpu.memory_space<vmem>>, vector<1x8xf32>,
    %247 = vector.extract_strided_slice %203 {offsets = [0, 72], sizes = [8, 8], strides = [1, 1]} : vector<8x96xf32> to vector<8x8xf32>
    %248 = vector.extract_strided_slice %242 {offsets = [1, 0], sizes = [1, 8], strides = [1, 1]} : vector<4x8xf32> to vector<1x8xf32>
    %cst_132 = arith.constant dense<0.000000e+00> : vector<1x8xf32>
    %249 = tpu.matmul %248, %247, %cst_132 {dimension_numbers = #tpu.dot_dimension_numbers<[1], [0], [0], [1], [0, 0, 1, 1], [], []>} : vector<1x8xf32>, vector<8x8xf32>, vector<1x8xf32> -> vector<1x8xf32>
    %c0_133 = arith.constant 0 : index
    %c8_134 = arith.constant 8 : index
    %250 = vector.load %arg21[%c0_133, %c8_134] : memref<8x32xf32, #tpu.memory_space<vmem>>, vector<1x8xf32>
    tpu.vector_store %arg21[%c0_133, %c8_134], %249 {strides = array<i32>} : memref<8x32xf32, #tpu.memory_space<vmem>>, vector<1x8xf32>,
    %251 = vector.extract_strided_slice %203 {offsets = [0, 80], sizes = [8, 8], strides = [1, 1]} : vector<8x96xf32> to vector<8x8xf32>
    %252 = vector.extract_strided_slice %242 {offsets = [2, 0], sizes = [1, 8], strides = [1, 1]} : vector<4x8xf32> to vector<1x8xf32>
    %cst_135 = arith.constant dense<0.000000e+00> : vector<1x8xf32>
    %253 = tpu.matmul %252, %251, %cst_135 {dimension_numbers = #tpu.dot_dimension_numbers<[1], [0], [0], [1], [0, 0, 1, 1], [], []>} : vector<1x8xf32>, vector<8x8xf32>, vector<1x8xf32> -> vector<1x8xf32>
    %c0_136 = arith.constant 0 : index
    %c16_137 = arith.constant 16 : index
    %254 = vector.load %arg21[%c0_136, %c16_137] : memref<8x32xf32, #tpu.memory_space<vmem>>, vector<1x8xf32>
    tpu.vector_store %arg21[%c0_136, %c16_137], %253 {strides = array<i32>} : memref<8x32xf32, #tpu.memory_space<vmem>>, vector<1x8xf32>,
    %255 = vector.extract_strided_slice %203 {offsets = [0, 88], sizes = [8, 8], strides = [1, 1]} : vector<8x96xf32> to vector<8x8xf32>
    %256 = vector.extract_strided_slice %242 {offsets = [3, 0], sizes = [1, 8], strides = [1, 1]} : vector<4x8xf32> to vector<1x8xf32>
    %cst_138 = arith.constant dense<0.000000e+00> : vector<1x8xf32>
    %257 = tpu.matmul %256, %255, %cst_138 {dimension_numbers = #tpu.dot_dimension_numbers<[1], [0], [0], [1], [0, 0, 1, 1], [], []>} : vector<1x8xf32>, vector<8x8xf32>, vector<1x8xf32> -> vector<1x8xf32>
    %c0_139 = arith.constant 0 : index
    %c24_140 = arith.constant 24 : index
    %258 = vector.load %arg21[%c0_139, %c24_140] : memref<8x32xf32, #tpu.memory_space<vmem>>, vector<1x8xf32>
    tpu.vector_store %arg21[%c0_139, %c24_140], %257 {strides = array<i32>} : memref<8x32xf32, #tpu.memory_space<vmem>>, vector<1x8xf32>,
    %c0_141 = arith.constant 0 : index
    %c0_142 = arith.constant 0 : index
    %259 = vector.load %arg21[%c0_141, %c0_142] : memref<8x32xf32, #tpu.memory_space<vmem>>, vector<1x32xf32>
    %260 = vector.extract_strided_slice %196 {offsets = [0, 0], sizes = [1, 32], strides = [1, 1]} : vector<8x32xf32> to vector<1x32xf32>
    %c1_143 = arith.constant 1 : index
    %c0_144 = arith.constant 0 : index
    %c0_145 = arith.constant 0 : index
    %261 = vector.load %arg9[%c1_143, %c0_144, %c0_145] : memref<2x32x32xf32, #tpu.memory_space<vmem>>, vector<1x32x32xf32>
    %262 = vector.shape_cast %261 : vector<1x32x32xf32> to vector<32x32xf32>
    %cst_146 = arith.constant dense<0.000000e+00> : vector<1x32xf32>
    %263 = tpu.matmul %259, %262, %cst_146 {dimension_numbers = #tpu.dot_dimension_numbers<[1], [0], [0], [1], [0, 0, 1, 1], [], []>} : vector<1x32xf32>, vector<32x32xf32>, vector<1x32xf32> -> vector<1x32xf32>
    %c1_147 = arith.constant 1 : index
    %c0_148 = arith.constant 0 : index
    %c0_149 = arith.constant 0 : index
    %264 = vector.load %arg10[%c1_147, %c0_148, %c0_149] : memref<2x1x32xf32, #tpu.memory_space<vmem>>, vector<1x1x32xf32>
    %265 = vector.shape_cast %264 : vector<1x1x32xf32> to vector<1x32xf32>
    %266 = arith.addf %263, %265 : vector<1x32xf32>
    %267 = arith.addf %266, %260 : vector<1x32xf32>
    %c1_150 = arith.constant 1 : index
    %c0_151 = arith.constant 0 : index
    %c0_152 = arith.constant 0 : index
    %268 = vector.load %arg11[%c1_150, %c0_151, %c0_152] : memref<2x1x32xf32, #tpu.memory_space<vmem>>, vector<1x1x32xf32>
    %269 = vector.shape_cast %268 : vector<1x1x32xf32> to vector<1x32xf32>
    %c1_153 = arith.constant 1 : index
    %c0_154 = arith.constant 0 : index
    %c0_155 = arith.constant 0 : index
    %270 = vector.load %arg12[%c1_153, %c0_154, %c0_155] : memref<2x1x32xf32, #tpu.memory_space<vmem>>, vector<1x1x32xf32>
    %271 = vector.shape_cast %270 : vector<1x1x32xf32> to vector<1x32xf32>
    %cst_156 = arith.constant dense<0.000000e+00> : vector<1xf32>
    %272 = vector.multi_reduction <add>, %267, %cst_156 [1] : vector<1x32xf32> to vector<1xf32>
    %273 = vector.shape_cast %272 : vector<1xf32> to vector<1x1xf32>
    %cst_157 = arith.constant 3.200000e+01 : f32
    %274 = vector.broadcast %cst_157 : f32 to vector<1x1xf32>
    %275 = arith.divf %273, %274 : vector<1x1xf32>
    %276 = vector.broadcast %275 : vector<1x1xf32> to vector<1x32xf32>
    %277 = arith.subf %267, %276 : vector<1x32xf32>
    %278 = arith.mulf %277, %277 : vector<1x32xf32>
    %cst_158 = arith.constant dense<0.000000e+00> : vector<1xf32>
    %279 = vector.multi_reduction <add>, %278, %cst_158 [1] : vector<1x32xf32> to vector<1xf32>
    %280 = vector.shape_cast %279 : vector<1xf32> to vector<1x1xf32>
    %cst_159 = arith.constant 3.200000e+01 : f32
    %281 = vector.broadcast %cst_159 : f32 to vector<1x1xf32>
    %282 = arith.divf %280, %281 : vector<1x1xf32>
    %283 = vector.broadcast %275 : vector<1x1xf32> to vector<1x32xf32>
    %284 = arith.subf %267, %283 : vector<1x32xf32>
    %cst_160 = arith.constant 9.99999996E-13 : f32
    %285 = vector.broadcast %cst_160 : f32 to vector<1x1xf32>
    %286 = arith.addf %282, %285 : vector<1x1xf32>
    %287 = math.rsqrt %286 : vector<1x1xf32>
    %288 = vector.broadcast %287 : vector<1x1xf32> to vector<1x32xf32>
    %289 = arith.mulf %284, %288 : vector<1x32xf32>
    %290 = arith.mulf %289, %269 : vector<1x32xf32>
    %291 = arith.addf %290, %271 : vector<1x32xf32>
    %c1_161 = arith.constant 1 : index
    %c0_162 = arith.constant 0 : index
    %c0_163 = arith.constant 0 : index
    %292 = vector.load %arg13[%c1_161, %c0_162, %c0_163] : memref<2x32x64xf32, #tpu.memory_space<vmem>>, vector<1x32x64xf32>
    %293 = vector.shape_cast %292 : vector<1x32x64xf32> to vector<32x64xf32>
    %cst_164 = arith.constant dense<0.000000e+00> : vector<1x64xf32>
    %294 = tpu.matmul %291, %293, %cst_164 {dimension_numbers = #tpu.dot_dimension_numbers<[1], [0], [0], [1], [0, 0, 1, 1], [], []>} : vector<1x32xf32>, vector<32x64xf32>, vector<1x64xf32> -> vector<1x64xf32>
    %c1_165 = arith.constant 1 : index
    %c0_166 = arith.constant 0 : index
    %c0_167 = arith.constant 0 : index
    %295 = vector.load %arg14[%c1_165, %c0_166, %c0_167] : memref<2x1x64xf32, #tpu.memory_space<vmem>>, vector<1x1x64xf32>
    %296 = vector.shape_cast %295 : vector<1x1x64xf32> to vector<1x64xf32>
    %297 = arith.addf %294, %296 : vector<1x64xf32>
    %298 = arith.mulf %297, %297 : vector<1x64xf32>
    %299 = arith.mulf %297, %298 : vector<1x64xf32>
    %cst_168 = arith.constant 4.471500e-02 : f32
    %300 = vector.broadcast %cst_168 : f32 to vector<1x64xf32>
    %301 = arith.mulf %300, %299 : vector<1x64xf32>
    %302 = arith.addf %297, %301 : vector<1x64xf32>
    %cst_169 = arith.constant 0.797884583 : f32
    %303 = vector.broadcast %cst_169 : f32 to vector<1x64xf32>
    %304 = arith.mulf %303, %302 : vector<1x64xf32>
    %305 = math.tanh %304 : vector<1x64xf32>
    %cst_170 = arith.constant 1.000000e+00 : f32
    %306 = vector.broadcast %cst_170 : f32 to vector<1x64xf32>
    %307 = arith.addf %306, %305 : vector<1x64xf32>
    %cst_171 = arith.constant 5.000000e-01 : f32
    %308 = vector.broadcast %cst_171 : f32 to vector<1x64xf32>
    %309 = arith.mulf %308, %307 : vector<1x64xf32>
    %310 = arith.mulf %297, %309 : vector<1x64xf32>
    %c1_172 = arith.constant 1 : index
    %c0_173 = arith.constant 0 : index
    %c0_174 = arith.constant 0 : index
    %311 = vector.load %arg15[%c1_172, %c0_173, %c0_174] : memref<2x64x32xf32, #tpu.memory_space<vmem>>, vector<1x64x32xf32>
    %312 = vector.shape_cast %311 : vector<1x64x32xf32> to vector<64x32xf32>
    %cst_175 = arith.constant dense<0.000000e+00> : vector<1x32xf32>
    %313 = tpu.matmul %310, %312, %cst_175 {dimension_numbers = #tpu.dot_dimension_numbers<[1], [0], [0], [1], [0, 0, 1, 1], [], []>} : vector<1x64xf32>, vector<64x32xf32>, vector<1x32xf32> -> vector<1x32xf32>
    %c1_176 = arith.constant 1 : index
    %c0_177 = arith.constant 0 : index
    %c0_178 = arith.constant 0 : index
    %314 = vector.load %arg16[%c1_176, %c0_177, %c0_178] : memref<2x1x32xf32, #tpu.memory_space<vmem>>, vector<1x1x32xf32>
    %315 = vector.shape_cast %314 : vector<1x1x32xf32> to vector<1x32xf32>
    %316 = arith.addf %313, %315 : vector<1x32xf32>
    %317 = arith.addf %316, %291 : vector<1x32xf32>
    %c1_179 = arith.constant 1 : index
    %c0_180 = arith.constant 0 : index
    %c0_181 = arith.constant 0 : index
    %318 = vector.load %arg17[%c1_179, %c0_180, %c0_181] : memref<2x1x32xf32, #tpu.memory_space<vmem>>, vector<1x1x32xf32>
    %319 = vector.shape_cast %318 : vector<1x1x32xf32> to vector<1x32xf32>
    %c1_182 = arith.constant 1 : index
    %c0_183 = arith.constant 0 : index
    %c0_184 = arith.constant 0 : index
    %320 = vector.load %arg18[%c1_182, %c0_183, %c0_184] : memref<2x1x32xf32, #tpu.memory_space<vmem>>, vector<1x1x32xf32>
    %321 = vector.shape_cast %320 : vector<1x1x32xf32> to vector<1x32xf32>
    %cst_185 = arith.constant dense<0.000000e+00> : vector<1xf32>
    %322 = vector.multi_reduction <add>, %317, %cst_185 [1] : vector<1x32xf32> to vector<1xf32>
    %323 = vector.shape_cast %322 : vector<1xf32> to vector<1x1xf32>
    %cst_186 = arith.constant 3.200000e+01 : f32
    %324 = vector.broadcast %cst_186 : f32 to vector<1x1xf32>
    %325 = arith.divf %323, %324 : vector<1x1xf32>
    %326 = vector.broadcast %325 : vector<1x1xf32> to vector<1x32xf32>
    %327 = arith.subf %317, %326 : vector<1x32xf32>
    %328 = arith.mulf %327, %327 : vector<1x32xf32>
    %cst_187 = arith.constant dense<0.000000e+00> : vector<1xf32>
    %329 = vector.multi_reduction <add>, %328, %cst_187 [1] : vector<1x32xf32> to vector<1xf32>
    %330 = vector.shape_cast %329 : vector<1xf32> to vector<1x1xf32>
    %cst_188 = arith.constant 3.200000e+01 : f32
    %331 = vector.broadcast %cst_188 : f32 to vector<1x1xf32>
    %332 = arith.divf %330, %331 : vector<1x1xf32>
    %333 = vector.broadcast %325 : vector<1x1xf32> to vector<1x32xf32>
    %334 = arith.subf %317, %333 : vector<1x32xf32>
    %cst_189 = arith.constant 9.99999996E-13 : f32
    %335 = vector.broadcast %cst_189 : f32 to vector<1x1xf32>
    %336 = arith.addf %332, %335 : vector<1x1xf32>
    %337 = math.rsqrt %336 : vector<1x1xf32>
    %338 = vector.broadcast %337 : vector<1x1xf32> to vector<1x32xf32>
    %339 = arith.mulf %334, %338 : vector<1x32xf32>
    %340 = arith.mulf %339, %319 : vector<1x32xf32>
    %341 = arith.addf %340, %321 : vector<1x32xf32>
    %c0_190 = arith.constant 0 : index
    %c0_191 = arith.constant 0 : index
    %c0_192 = arith.constant 0 : index
    %342 = vector.load %arg19[%c0_190, %c0_191, %c0_192] : memref<1x1x32xf32, #tpu.memory_space<vmem>>, vector<1x1x32xf32>
    %343 = vector.shape_cast %342 : vector<1x1x32xf32> to vector<1x32xf32>
    %344 = vector.shape_cast %341 : vector<1x32xf32> to vector<1x1x32xf32>
    tpu.vector_store %arg19[%c0_190, %c0_191, %c0_192], %344 {strides = array<i32>} : memref<1x1x32xf32, #tpu.memory_space<vmem>>, vector<1x1x32xf32>,
    return
  }
  func.func @transform_0(%arg0: i32) -> (i32, i32, i32) {
    %c0_i32 = arith.constant 0 : i32
    %c0_i32_0 = arith.constant 0 : i32
    %c0_i32_1 = arith.constant 0 : i32
    return %arg0, %c0_i32, %c0_i32_0 : i32, i32, i32
  }
  func.func @transform_1(%arg0: i32) -> (i32, i32, i32) {
    %c0_i32 = arith.constant 0 : i32
    %c0_i32_0 = arith.constant 0 : i32
    %c0_i32_1 = arith.constant 0 : i32
    return %arg0, %c0_i32, %c0_i32_0 : i32, i32, i32
  }
  func.func @transform_2(%arg0: i32) -> (i32, i32) {
    %c0_i32 = arith.constant 0 : i32
    %c0_i32_0 = arith.constant 0 : i32
    %c0_i32_1 = arith.constant 0 : i32
    return %c0_i32, %c0_i32_0 : i32, i32
  }
  func.func @transform_3(%arg0: i32) -> (i32, i32) {
    %c0_i32 = arith.constant 0 : i32
    %c0_i32_0 = arith.constant 0 : i32
    %c0_i32_1 = arith.constant 0 : i32
    return %c0_i32, %c0_i32_0 : i32, i32
  }
  func.func @transform_4(%arg0: i32) -> (i32, i32) {
    %c0_i32 = arith.constant 0 : i32
    %c0_i32_0 = arith.constant 0 : i32
    %c0_i32_1 = arith.constant 0 : i32
    return %c0_i32, %c0_i32_0 : i32, i32
  }
  func.func @transform_5(%arg0: i32) -> (i32, i32) {
    %c0_i32 = arith.constant 0 : i32
    %c0_i32_0 = arith.constant 0 : i32
    %c0_i32_1 = arith.constant 0 : i32
    return %c0_i32, %c0_i32_0 : i32, i32
  }
  func.func @transform_6(%arg0: i32) -> (i32, i32, i32) {
    %c0_i32 = arith.constant 0 : i32
    %c0_i32_0 = arith.constant 0 : i32
    %c0_i32_1 = arith.constant 0 : i32
    %c0_i32_2 = arith.constant 0 : i32
    return %c0_i32, %c0_i32_0, %c0_i32_1 : i32, i32, i32
  }
  func.func @transform_7(%arg0: i32) -> (i32, i32, i32) {
    %c0_i32 = arith.constant 0 : i32
    %c0_i32_0 = arith.constant 0 : i32
    %c0_i32_1 = arith.constant 0 : i32
    %c0_i32_2 = arith.constant 0 : i32
    return %c0_i32, %c0_i32_0, %c0_i32_1 : i32, i32, i32
  }
  func.func @transform_8(%arg0: i32) -> (i32, i32, i32) {
    %c0_i32 = arith.constant 0 : i32
    %c0_i32_0 = arith.constant 0 : i32
    %c0_i32_1 = arith.constant 0 : i32
    %c0_i32_2 = arith.constant 0 : i32
    return %c0_i32, %c0_i32_0, %c0_i32_1 : i32, i32, i32
  }
  func.func @transform_9(%arg0: i32) -> (i32, i32, i32) {
    %c0_i32 = arith.constant 0 : i32
    %c0_i32_0 = arith.constant 0 : i32
    %c0_i32_1 = arith.constant 0 : i32
    %c0_i32_2 = arith.constant 0 : i32
    return %c0_i32, %c0_i32_0, %c0_i32_1 : i32, i32, i32
  }
  func.func @transform_10(%arg0: i32) -> (i32, i32, i32) {
    %c0_i32 = arith.constant 0 : i32
    %c0_i32_0 = arith.constant 0 : i32
    %c0_i32_1 = arith.constant 0 : i32
    %c0_i32_2 = arith.constant 0 : i32
    return %c0_i32, %c0_i32_0, %c0_i32_1 : i32, i32, i32
  }
  func.func @transform_11(%arg0: i32) -> (i32, i32, i32) {
    %c0_i32 = arith.constant 0 : i32
    %c0_i32_0 = arith.constant 0 : i32
    %c0_i32_1 = arith.constant 0 : i32
    %c0_i32_2 = arith.constant 0 : i32
    return %c0_i32, %c0_i32_0, %c0_i32_1 : i32, i32, i32
  }
  func.func @transform_12(%arg0: i32) -> (i32, i32, i32) {
    %c0_i32 = arith.constant 0 : i32
    %c0_i32_0 = arith.constant 0 : i32
    %c0_i32_1 = arith.constant 0 : i32
    %c0_i32_2 = arith.constant 0 : i32
    return %c0_i32, %c0_i32_0, %c0_i32_1 : i32, i32, i32
  }
  func.func @transform_13(%arg0: i32) -> (i32, i32, i32) {
    %c0_i32 = arith.constant 0 : i32
    %c0_i32_0 = arith.constant 0 : i32
    %c0_i32_1 = arith.constant 0 : i32
    %c0_i32_2 = arith.constant 0 : i32
    return %c0_i32, %c0_i32_0, %c0_i32_1 : i32, i32, i32
  }
  func.func @transform_14(%arg0: i32) -> (i32, i32, i32) {
    %c0_i32 = arith.constant 0 : i32
    %c0_i32_0 = arith.constant 0 : i32
    %c0_i32_1 = arith.constant 0 : i32
    %c0_i32_2 = arith.constant 0 : i32
    return %c0_i32, %c0_i32_0, %c0_i32_1 : i32, i32, i32
  }
  func.func @transform_15(%arg0: i32) -> (i32, i32, i32) {
    %c0_i32 = arith.constant 0 : i32
    %c0_i32_0 = arith.constant 0 : i32
    %c0_i32_1 = arith.constant 0 : i32
    %c0_i32_2 = arith.constant 0 : i32
    return %c0_i32, %c0_i32_0, %c0_i32_1 : i32, i32, i32
  }
  func.func @transform_16(%arg0: i32) -> (i32, i32, i32) {
    %c0_i32 = arith.constant 0 : i32
    %c0_i32_0 = arith.constant 0 : i32
    %c0_i32_1 = arith.constant 0 : i32
    %c0_i32_2 = arith.constant 0 : i32
    return %c0_i32, %c0_i32_0, %c0_i32_1 : i32, i32, i32
  }
  func.func @transform_17(%arg0: i32) -> (i32, i32, i32) {
    %c0_i32 = arith.constant 0 : i32
    %c0_i32_0 = arith.constant 0 : i32
    %c0_i32_1 = arith.constant 0 : i32
    %c0_i32_2 = arith.constant 0 : i32
    return %c0_i32, %c0_i32_0, %c0_i32_1 : i32, i32, i32
  }
  func.func @transform_18(%arg0: i32) -> (i32, i32, i32) {
    %c0_i32 = arith.constant 0 : i32
    %c0_i32_0 = arith.constant 0 : i32
    %c0_i32_1 = arith.constant 0 : i32
    return %arg0, %c0_i32, %c0_i32_0 : i32, i32, i32
  }
}

</mosaic_0001>

<llo_original>
// kernel: tpu_custom_call.1
$region0: #{tpu_custom_call.1}
  #allocation0 [shape = 'u32[]', space=smem, size = 0x4, offset = 0x4, fixed_abs, tag = 'smem constant byte address 0x4 - core index']
  #allocation1 [shape = 'u32[72,128]{1,0:T(1,128)}', space=vmem, size = 0x9000, scoped, tag = 'internal scratch']
  #allocation2 [shape = 'f32[32,8]{1,0:T(8,128)}', space=vmem, size = 0x4000, scoped, tag = 'scratch operand']
  #allocation3 [shape = 'f32[8,32]{1,0:T(8,128)}', space=vmem, size = 0x1000, scoped, tag = 'scratch operand']
  %s0 = inlined_call_operand.vmem [shape: s32[2,8,1], index: 0, kind: input, shape index: {}]
  %s1 = inlined_call_operand.vmem [shape: s32[2,1,8], index: 1, kind: input, shape index: {}]
  %s2 = inlined_call_operand.vmem [shape: f32[100,32], index: 2, kind: input, shape index: {}]
  %s3 = inlined_call_operand.vmem [shape: f32[16,32], index: 3, kind: input, shape index: {}]
  %s4 = inlined_call_operand.vmem [shape: f32[1,32], index: 4, kind: input, shape index: {}]
  %s5 = inlined_call_operand.vmem [shape: f32[1,32], index: 5, kind: input, shape index: {}]
  %s6 = inlined_call_operand.vmem [shape: f32[2,32,96], index: 6, kind: input, shape index: {}]
  %s7 = inlined_call_operand.vmem [shape: f32[2,1,96], index: 7, kind: input, shape index: {}]
  %s8 = inlined_call_operand.vmem [shape: f32[2,32,32], index: 8, kind: input, shape index: {}]
  %s9 = inlined_call_operand.vmem [shape: f32[2,1,32], index: 9, kind: input, shape index: {}]
  %s10 = inlined_call_operand.vmem [shape: f32[2,1,32], index: 10, kind: input, shape index: {}]
  %s11 = inlined_call_operand.vmem [shape: f32[2,1,32], index: 11, kind: input, shape index: {}]
  %s12 = inlined_call_operand.vmem [shape: f32[2,32,64], index: 12, kind: input, shape index: {}]
  %s13 = inlined_call_operand.vmem [shape: f32[2,1,64], index: 13, kind: input, shape index: {}]
  %s14 = inlined_call_operand.vmem [shape: f32[2,64,32], index: 14, kind: input, shape index: {}]
  %s15 = inlined_call_operand.vmem [shape: f32[2,1,32], index: 15, kind: input, shape index: {}]
  %s16 = inlined_call_operand.vmem [shape: f32[2,1,32], index: 16, kind: input, shape index: {}]
  %s17 = inlined_call_operand.vmem [shape: f32[2,1,32], index: 17, kind: input, shape index: {}]
  %s18 = inlined_call_operand.hbm [shape: f32[2,1,32], index: 18, kind: output, shape index: {}]
  %s19 = sld [smem:[#allocation0]]
  $region105: #{tpu_custom_call.1} parent=0
    _
  %s21 = ssub.s32 1, %s19
  %s22 = scalar_select 0, %s21, %s19
  $region1: #{tpu_custom_call.1} parent=0
    #allocation4 [shape = 'u8[1024]{0}', space=vmem, size = 0x400, scoped, tag = 'output window, operand 0']
    #allocation5 [shape = 's32[2]{0}', space=sflag, size = 0x8, scoped, tag = 'scoped memory for tpu_custom_call.1']
    %23 = vsyncpa [#allocation5], 0
    %s24 = scalar_lea.sflag [#allocation5], 1
    %25 = vsyncpa %s24, 0
    loop: start=0, step=1, limit=4
    $region2: #{tpu_custom_call.1} parent=1 // loop_pre_header
      _
    $region3: #{tpu_custom_call.1} parent=1 // loop_header
      %s27 = sphi 0, %s31
      %p28 = scmp.ge.s32.totalorder %s27, 4
      %s37 = sphi 0, %s39
      %s40 = sphi 0, %s37
      %s41 = sphi 0, %s40
      %s57 = sphi 0, %s41
      %s63 = sphi 0, %s65
      %s66 = sphi 0, %s63
      %s67 = sphi 0, %s66
      %s83 = sphi 0, %s67
      %s87 = sphi 0, %s87
      %s89 = sphi 0, %s87
      %s90 = sphi 0, %s89
      %s104 = sphi 0, %s90
      %s108 = sphi 0, %s108
      %s110 = sphi 0, %s108
      %s111 = sphi 0, %s110
      %s125 = sphi 0, %s111
      %s129 = sphi 0, %s129
      %s131 = sphi 0, %s129
      %s132 = sphi 0, %s131
      %s146 = sphi 0, %s132
      %s150 = sphi 0, %s150
      %s152 = sphi 0, %s150
      %s153 = sphi 0, %s152
      %s167 = sphi 0, %s153
      %s171 = sphi 0, %s171
      %s173 = sphi 0, %s171
      %s174 = sphi 0, %s173
      %s188 = sphi 0, %s174
      %s192 = sphi 0, %s192
      %s194 = sphi 0, %s192
      %s195 = sphi 0, %s194
      %s209 = sphi 0, %s195
      %s213 = sphi 0, %s213
      %s215 = sphi 0, %s213
      %s216 = sphi 0, %s215
      %s230 = sphi 0, %s216
      %s234 = sphi 0, %s234
      %s236 = sphi 0, %s234
      %s237 = sphi 0, %s236
      %s251 = sphi 0, %s237
      %s255 = sphi 0, %s255
      %s257 = sphi 0, %s255
      %s258 = sphi 0, %s257
      %s272 = sphi 0, %s258
      %s276 = sphi 0, %s276
      %s278 = sphi 0, %s276
      %s279 = sphi 0, %s278
      %s293 = sphi 0, %s279
      %s297 = sphi 0, %s297
      %s299 = sphi 0, %s297
      %s300 = sphi 0, %s299
      %s314 = sphi 0, %s300
      %s318 = sphi 0, %s318
      %s320 = sphi 0, %s318
      %s321 = sphi 0, %s320
      %s335 = sphi 0, %s321
      %s339 = sphi 0, %s339
      %s341 = sphi 0, %s339
      %s342 = sphi 0, %s341
      %s356 = sphi 0, %s342
      %s360 = sphi 0, %s360
      %s362 = sphi 0, %s360
      %s363 = sphi 0, %s362
      %s377 = sphi 0, %s363
      %s381 = sphi 0, %s381
      %s383 = sphi 0, %s381
      %s384 = sphi 0, %s383
      %s398 = sphi 0, %s384
      %s402 = sphi 0, %s402
      %s404 = sphi 0, %s402
      %s405 = sphi 0, %s404
      %s419 = sphi 0, %s405
      %s425 = sphi 0, %s427
      %s428 = sphi 0, %s425
      %s429 = sphi 0, %s428
      %s445 = sphi 0, %s429
    $region4: #{tpu_custom_call.1} parent=1 // loop_header_branch
      %30 = sbr.rel (%p28) target = $region8
    $region5: #{tpu_custom_call.1} parent=1 // loop_body
      %s32 = ssub.s32 %s27, 1
      %s33 = ssub.s32 %s27, 2
      %s34 = sadd.s32 %s27, 1
      %s35 = ssub.s32 %s27, %s34
      %p36 = scmp.eq.s32.totalorder %s35, 0
      %s38 = sadd.s32 %s37, 1
      %s39 = scalar_select %p36, %s37, %s38
      %p42 = pneg %p36
      %p43 = scmp.eq.s32.totalorder %s27, 1
      %p44 = por %p42, %p43
      %p45 = scmp.ne.s32.totalorder %s37, %s40
      %p46 = scmp.eq.s32.totalorder %s27, 0
      %p47 = por %p45, %p46
      %p48 = scmp.ne.s32.totalorder %s37, %s40
      %p49 = scmp.eq.s32.totalorder %s32, 1
      %p50 = por %p48, %p49
      %p51 = scmp.ne.s32.totalorder %s40, %s41
      %p52 = scmp.eq.s32.totalorder %s32, 0
      %p53 = por %p51, %p52
      %p54 = scmp.ne.s32.totalorder %s40, %s41
      %p55 = scmp.eq.s32.totalorder %s33, 1
      %p56 = por %p54, %p55
      %p58 = scmp.ne.s32.totalorder %s41, %s57
      %p59 = scmp.eq.s32.totalorder %s33, 0
      %p60 = por %p58, %p59
      %s61 = ssub.s32 %s27, %s34
      %p62 = scmp.eq.s32.totalorder %s61, 0
      %s64 = sadd.s32 %s63, 1
      %s65 = scalar_select %p62, %s63, %s64
      %p68 = pneg %p62
      %p69 = scmp.eq.s32.totalorder %s27, 1
      %p70 = por %p68, %p69
      %p71 = scmp.ne.s32.totalorder %s63, %s66
      %p72 = scmp.eq.s32.totalorder %s27, 0
      %p73 = por %p71, %p72
      %p74 = scmp.ne.s32.totalorder %s63, %s66
      %p75 = scmp.eq.s32.totalorder %s32, 1
      %p76 = por %p74, %p75
      %p77 = scmp.ne.s32.totalorder %s66, %s67
      %p78 = scmp.eq.s32.totalorder %s32, 0
      %p79 = por %p77, %p78
      %p80 = scmp.ne.s32.totalorder %s66, %s67
      %p81 = scmp.eq.s32.totalorder %s33, 1
      %p82 = por %p80, %p81
      %p84 = scmp.ne.s32.totalorder %s67, %s83
      %p85 = scmp.eq.s32.totalorder %s33, 0
      %p86 = por %p84, %p85
      %s88 = sadd.s32 %s87, 1
      %p91 = scmp.eq.s32.totalorder %s27, 1
      %p92 = scmp.ne.s32.totalorder %s87, %s89
      %p93 = scmp.eq.s32.totalorder %s27, 0
      %p94 = por %p92, %p93
      %p95 = scmp.ne.s32.totalorder %s87, %s89
      %p96 = scmp.eq.s32.totalorder %s32, 1
      %p97 = por %p95, %p96
      %p98 = scmp.ne.s32.totalorder %s89, %s90
      %p99 = scmp.eq.s32.totalorder %s32, 0
      %p100 = por %p98, %p99
      %p101 = scmp.ne.s32.totalorder %s89, %s90
      %p102 = scmp.eq.s32.totalorder %s33, 1
      %p103 = por %p101, %p102
      %p105 = scmp.ne.s32.totalorder %s90, %s104
      %p106 = scmp.eq.s32.totalorder %s33, 0
      %p107 = por %p105, %p106
      %s109 = sadd.s32 %s108, 1
      %p112 = scmp.eq.s32.totalorder %s27, 1
      %p113 = scmp.ne.s32.totalorder %s108, %s110
      %p114 = scmp.eq.s32.totalorder %s27, 0
      %p115 = por %p113, %p114
      %p116 = scmp.ne.s32.totalorder %s108, %s110
      %p117 = scmp.eq.s32.totalorder %s32, 1
      %p118 = por %p116, %p117
      %p119 = scmp.ne.s32.totalorder %s110, %s111
      %p120 = scmp.eq.s32.totalorder %s32, 0
      %p121 = por %p119, %p120
      %p122 = scmp.ne.s32.totalorder %s110, %s111
      %p123 = scmp.eq.s32.totalorder %s33, 1
      %p124 = por %p122, %p123
      %p126 = scmp.ne.s32.totalorder %s111, %s125
      %p127 = scmp.eq.s32.totalorder %s33, 0
      %p128 = por %p126, %p127
      %s130 = sadd.s32 %s129, 1
      %p133 = scmp.eq.s32.totalorder %s27, 1
      %p134 = scmp.ne.s32.totalorder %s129, %s131
      %p135 = scmp.eq.s32.totalorder %s27, 0
      %p136 = por %p134, %p135
      %p137 = scmp.ne.s32.totalorder %s129, %s131
      %p138 = scmp.eq.s32.totalorder %s32, 1
      %p139 = por %p137, %p138
      %p140 = scmp.ne.s32.totalorder %s131, %s132
      %p141 = scmp.eq.s32.totalorder %s32, 0
      %p142 = por %p140, %p141
      %p143 = scmp.ne.s32.totalorder %s131, %s132
      %p144 = scmp.eq.s32.totalorder %s33, 1
      %p145 = por %p143, %p144
      %p147 = scmp.ne.s32.totalorder %s132, %s146
      %p148 = scmp.eq.s32.totalorder %s33, 0
      %p149 = por %p147, %p148
      %s151 = sadd.s32 %s150, 1
      %p154 = scmp.eq.s32.totalorder %s27, 1
      %p155 = scmp.ne.s32.totalorder %s150, %s152
      %p156 = scmp.eq.s32.totalorder %s27, 0
      %p157 = por %p155, %p156
      %p158 = scmp.ne.s32.totalorder %s150, %s152
      %p159 = scmp.eq.s32.totalorder %s32, 1
      %p160 = por %p158, %p159
      %p161 = scmp.ne.s32.totalorder %s152, %s153
      %p162 = scmp.eq.s32.totalorder %s32, 0
      %p163 = por %p161, %p162
      %p164 = scmp.ne.s32.totalorder %s152, %s153
      %p165 = scmp.eq.s32.totalorder %s33, 1
      %p166 = por %p164, %p165
      %p168 = scmp.ne.s32.totalorder %s153, %s167
      %p169 = scmp.eq.s32.totalorder %s33, 0
      %p170 = por %p168, %p169
      %s172 = sadd.s32 %s171, 1
      %p175 = scmp.eq.s32.totalorder %s27, 1
      %p176 = scmp.ne.s32.totalorder %s171, %s173
      %p177 = scmp.eq.s32.totalorder %s27, 0
      %p178 = por %p176, %p177
      %p179 = scmp.ne.s32.totalorder %s171, %s173
      %p180 = scmp.eq.s32.totalorder %s32, 1
      %p181 = por %p179, %p180
      %p182 = scmp.ne.s32.totalorder %s173, %s174
      %p183 = scmp.eq.s32.totalorder %s32, 0
      %p184 = por %p182, %p183
      %p185 = scmp.ne.s32.totalorder %s173, %s174
      %p186 = scmp.eq.s32.totalorder %s33, 1
      %p187 = por %p185, %p186
      %p189 = scmp.ne.s32.totalorder %s174, %s188
      %p190 = scmp.eq.s32.totalorder %s33, 0
      %p191 = por %p189, %p190
      %s193 = sadd.s32 %s192, 1
      %p196 = scmp.eq.s32.totalorder %s27, 1
      %p197 = scmp.ne.s32.totalorder %s192, %s194
      %p198 = scmp.eq.s32.totalorder %s27, 0
      %p199 = por %p197, %p198
      %p200 = scmp.ne.s32.totalorder %s192, %s194
      %p201 = scmp.eq.s32.totalorder %s32, 1
      %p202 = por %p200, %p201
      %p203 = scmp.ne.s32.totalorder %s194, %s195
      %p204 = scmp.eq.s32.totalorder %s32, 0
      %p205 = por %p203, %p204
      %p206 = scmp.ne.s32.totalorder %s194, %s195
      %p207 = scmp.eq.s32.totalorder %s33, 1
      %p208 = por %p206, %p207
      %p210 = scmp.ne.s32.totalorder %s195, %s209
      %p211 = scmp.eq.s32.totalorder %s33, 0
      %p212 = por %p210, %p211
      %s214 = sadd.s32 %s213, 1
      %p217 = scmp.eq.s32.totalorder %s27, 1
      %p218 = scmp.ne.s32.totalorder %s213, %s215
      %p219 = scmp.eq.s32.totalorder %s27, 0
      %p220 = por %p218, %p219
      %p221 = scmp.ne.s32.totalorder %s213, %s215
      %p222 = scmp.eq.s32.totalorder %s32, 1
      %p223 = por %p221, %p222
      %p224 = scmp.ne.s32.totalorder %s215, %s216
      %p225 = scmp.eq.s32.totalorder %s32, 0
      %p226 = por %p224, %p225
      %p227 = scmp.ne.s32.totalorder %s215, %s216
      %p228 = scmp.eq.s32.totalorder %s33, 1
      %p229 = por %p227, %p228
      %p231 = scmp.ne.s32.totalorder %s216, %s230
      %p232 = scmp.eq.s32.totalorder %s33, 0
      %p233 = por %p231, %p232
      %s235 = sadd.s32 %s234, 1
      %p238 = scmp.eq.s32.totalorder %s27, 1
      %p239 = scmp.ne.s32.totalorder %s234, %s236
      %p240 = scmp.eq.s32.totalorder %s27, 0
      %p241 = por %p239, %p240
      %p242 = scmp.ne.s32.totalorder %s234, %s236
      %p243 = scmp.eq.s32.totalorder %s32, 1
      %p244 = por %p242, %p243
      %p245 = scmp.ne.s32.totalorder %s236, %s237
      %p246 = scmp.eq.s32.totalorder %s32, 0
      %p247 = por %p245, %p246
      %p248 = scmp.ne.s32.totalorder %s236, %s237
      %p249 = scmp.eq.s32.totalorder %s33, 1
      %p250 = por %p248, %p249
      %p252 = scmp.ne.s32.totalorder %s237, %s251
      %p253 = scmp.eq.s32.totalorder %s33, 0
      %p254 = por %p252, %p253
      %s256 = sadd.s32 %s255, 1
      %p259 = scmp.eq.s32.totalorder %s27, 1
      %p260 = scmp.ne.s32.totalorder %s255, %s257
      %p261 = scmp.eq.s32.totalorder %s27, 0
      %p262 = por %p260, %p261
      %p263 = scmp.ne.s32.totalorder %s255, %s257
      %p264 = scmp.eq.s32.totalorder %s32, 1
      %p265 = por %p263, %p264
      %p266 = scmp.ne.s32.totalorder %s257, %s258
      %p267 = scmp.eq.s32.totalorder %s32, 0
      %p268 = por %p266, %p267
      %p269 = scmp.ne.s32.totalorder %s257, %s258
      %p270 = scmp.eq.s32.totalorder %s33, 1
      %p271 = por %p269, %p270
      %p273 = scmp.ne.s32.totalorder %s258, %s272
      %p274 = scmp.eq.s32.totalorder %s33, 0
      %p275 = por %p273, %p274
      %s277 = sadd.s32 %s276, 1
      %p280 = scmp.eq.s32.totalorder %s27, 1
      %p281 = scmp.ne.s32.totalorder %s276, %s278
      %p282 = scmp.eq.s32.totalorder %s27, 0
      %p283 = por %p281, %p282
      %p284 = scmp.ne.s32.totalorder %s276, %s278
      %p285 = scmp.eq.s32.totalorder %s32, 1
      %p286 = por %p284, %p285
      %p287 = scmp.ne.s32.totalorder %s278, %s279
      %p288 = scmp.eq.s32.totalorder %s32, 0
      %p289 = por %p287, %p288
      %p290 = scmp.ne.s32.totalorder %s278, %s279
      %p291 = scmp.eq.s32.totalorder %s33, 1
      %p292 = por %p290, %p291
      %p294 = scmp.ne.s32.totalorder %s279, %s293
      %p295 = scmp.eq.s32.totalorder %s33, 0
      %p296 = por %p294, %p295
      %s298 = sadd.s32 %s297, 1
      %p301 = scmp.eq.s32.totalorder %s27, 1
      %p302 = scmp.ne.s32.totalorder %s297, %s299
      %p303 = scmp.eq.s32.totalorder %s27, 0
      %p304 = por %p302, %p303
      %p305 = scmp.ne.s32.totalorder %s297, %s299
      %p306 = scmp.eq.s32.totalorder %s32, 1
      %p307 = por %p305, %p306
      %p308 = scmp.ne.s32.totalorder %s299, %s300
      %p309 = scmp.eq.s32.totalorder %s32, 0
      %p310 = por %p308, %p309
      %p311 = scmp.ne.s32.totalorder %s299, %s300
      %p312 = scmp.eq.s32.totalorder %s33, 1
      %p313 = por %p311, %p312
      %p315 = scmp.ne.s32.totalorder %s300, %s314
      %p316 = scmp.eq.s32.totalorder %s33, 0
      %p317 = por %p315, %p316
      %s319 = sadd.s32 %s318, 1
      %p322 = scmp.eq.s32.totalorder %s27, 1
      %p323 = scmp.ne.s32.totalorder %s318, %s320
      %p324 = scmp.eq.s32.totalorder %s27, 0
      %p325 = por %p323, %p324
      %p326 = scmp.ne.s32.totalorder %s318, %s320
      %p327 = scmp.eq.s32.totalorder %s32, 1
      %p328 = por %p326, %p327
      %p329 = scmp.ne.s32.totalorder %s320, %s321
      %p330 = scmp.eq.s32.totalorder %s32, 0
      %p331 = por %p329, %p330
      %p332 = scmp.ne.s32.totalorder %s320, %s321
      %p333 = scmp.eq.s32.totalorder %s33, 1
      %p334 = por %p332, %p333
      %p336 = scmp.ne.s32.totalorder %s321, %s335
      %p337 = scmp.eq.s32.totalorder %s33, 0
      %p338 = por %p336, %p337
      %s340 = sadd.s32 %s339, 1
      %p343 = scmp.eq.s32.totalorder %s27, 1
      %p344 = scmp.ne.s32.totalorder %s339, %s341
      %p345 = scmp.eq.s32.totalorder %s27, 0
      %p346 = por %p344, %p345
      %p347 = scmp.ne.s32.totalorder %s339, %s341
      %p348 = scmp.eq.s32.totalorder %s32, 1
      %p349 = por %p347, %p348
      %p350 = scmp.ne.s32.totalorder %s341, %s342
      %p351 = scmp.eq.s32.totalorder %s32, 0
      %p352 = por %p350, %p351
      %p353 = scmp.ne.s32.totalorder %s341, %s342
      %p354 = scmp.eq.s32.totalorder %s33, 1
      %p355 = por %p353, %p354
      %p357 = scmp.ne.s32.totalorder %s342, %s356
      %p358 = scmp.eq.s32.totalorder %s33, 0
      %p359 = por %p357, %p358
      %s361 = sadd.s32 %s360, 1
      %p364 = scmp.eq.s32.totalorder %s27, 1
      %p365 = scmp.ne.s32.totalorder %s360, %s362
      %p366 = scmp.eq.s32.totalorder %s27, 0
      %p367 = por %p365, %p366
      %p368 = scmp.ne.s32.totalorder %s360, %s362
      %p369 = scmp.eq.s32.totalorder %s32, 1
      %p370 = por %p368, %p369
      %p371 = scmp.ne.s32.totalorder %s362, %s363
      %p372 = scmp.eq.s32.totalorder %s32, 0
      %p373 = por %p371, %p372
      %p374 = scmp.ne.s32.totalorder %s362, %s363
      %p375 = scmp.eq.s32.totalorder %s33, 1
      %p376 = por %p374, %p375
      %p378 = scmp.ne.s32.totalorder %s363, %s377
      %p379 = scmp.eq.s32.totalorder %s33, 0
      %p380 = por %p378, %p379
      %s382 = sadd.s32 %s381, 1
      %p385 = scmp.eq.s32.totalorder %s27, 1
      %p386 = scmp.ne.s32.totalorder %s381, %s383
      %p387 = scmp.eq.s32.totalorder %s27, 0
      %p388 = por %p386, %p387
      %p389 = scmp.ne.s32.totalorder %s381, %s383
      %p390 = scmp.eq.s32.totalorder %s32, 1
      %p391 = por %p389, %p390
      %p392 = scmp.ne.s32.totalorder %s383, %s384
      %p393 = scmp.eq.s32.totalorder %s32, 0
      %p394 = por %p392, %p393
      %p395 = scmp.ne.s32.totalorder %s383, %s384
      %p396 = scmp.eq.s32.totalorder %s33, 1
      %p397 = por %p395, %p396
      %p399 = scmp.ne.s32.totalorder %s384, %s398
      %p400 = scmp.eq.s32.totalorder %s33, 0
      %p401 = por %p399, %p400
      %s403 = sadd.s32 %s402, 1
      %p406 = scmp.eq.s32.totalorder %s27, 1
      %p407 = scmp.ne.s32.totalorder %s402, %s404
      %p408 = scmp.eq.s32.totalorder %s27, 0
      %p409 = por %p407, %p408
      %p410 = scmp.ne.s32.totalorder %s402, %s404
      %p411 = scmp.eq.s32.totalorder %s32, 1
      %p412 = por %p410, %p411
      %p413 = scmp.ne.s32.totalorder %s404, %s405
      %p414 = scmp.eq.s32.totalorder %s32, 0
      %p415 = por %p413, %p414
      %p416 = scmp.ne.s32.totalorder %s404, %s405
      %p417 = scmp.eq.s32.totalorder %s33, 1
      %p418 = por %p416, %p417
      %p420 = scmp.ne.s32.totalorder %s405, %s419
      %p421 = scmp.eq.s32.totalorder %s33, 0
      %p422 = por %p420, %p421
      %s423 = ssub.s32 %s27, %s34
      %p424 = scmp.eq.s32.totalorder %s423, 0
      %s426 = sadd.s32 %s425, 1
      %s427 = scalar_select %p424, %s425, %s426
      %p430 = pneg %p424
      %p431 = scmp.eq.s32.totalorder %s27, 1
      %p432 = por %p430, %p431
      %p433 = scmp.ne.s32.totalorder %s425, %s428
      %p434 = scmp.eq.s32.totalorder %s27, 0
      %p435 = por %p433, %p434
      %p436 = scmp.ne.s32.totalorder %s425, %s428
      %p437 = scmp.eq.s32.totalorder %s32, 1
      %p438 = por %p436, %p437
      %p439 = scmp.ne.s32.totalorder %s428, %s429
      %p440 = scmp.eq.s32.totalorder %s32, 0
      %p441 = por %p439, %p440
      %p442 = scmp.ne.s32.totalorder %s428, %s429
      %p443 = scmp.eq.s32.totalorder %s33, 1
      %p444 = por %p442, %p443
      %p446 = scmp.ne.s32.totalorder %s429, %s445
      %p447 = scmp.eq.s32.totalorder %s33, 0
      %p448 = por %p446, %p447
      %p449 = scmp.le.s32.totalorder 1, %s27
      %p450 = scmp.lt.s32.totalorder %s27, 3
      %p451 = pnand %p449, %p450
      %p452 = pneg %p451
      // Predicated region
      $region9: #{tpu_custom_call.1} parent=5 // pred_check
        _
      $region10: #{tpu_custom_call.1} parent=5 // pred_check_branch
        %454 = sbr.rel (%p451) target = $region12
      $region11: #{tpu_custom_call.1} parent=5 // pred_region
        %s455 = ssub.s32 %s27, 1
        // Predicated region
        $region13: #{tpu_custom_call.1} parent=11 // pred_check
          %p456 = pneg %p100
        $region14: #{tpu_custom_call.1} parent=11 // pred_check_branch
          %458 = sbr.rel (%p456) target = $region16
        $region15: #{tpu_custom_call.1} parent=11 // pred_region
          _
        $region16: #{tpu_custom_call.1} parent=11 // pred_fallthru
          _
        // Predicated region
        $region17: #{tpu_custom_call.1} parent=11 // pred_check
          %p459 = pneg %p121
        $region18: #{tpu_custom_call.1} parent=11 // pred_check_branch
          %461 = sbr.rel (%p459) target = $region20
        $region19: #{tpu_custom_call.1} parent=11 // pred_region
          _
        $region20: #{tpu_custom_call.1} parent=11 // pred_fallthru
          _
        // Predicated region
        $region21: #{tpu_custom_call.1} parent=11 // pred_check
          %p462 = pneg %p142
        $region22: #{tpu_custom_call.1} parent=11 // pred_check_branch
          %464 = sbr.rel (%p462) target = $region24
        $region23: #{tpu_custom_call.1} parent=11 // pred_region
          _
        $region24: #{tpu_custom_call.1} parent=11 // pred_fallthru
          _
        // Predicated region
        $region25: #{tpu_custom_call.1} parent=11 // pred_check
          %p465 = pneg %p163
        $region26: #{tpu_custom_call.1} parent=11 // pred_check_branch
          %467 = sbr.rel (%p465) target = $region28
        $region27: #{tpu_custom_call.1} parent=11 // pred_region
          _
        $region28: #{tpu_custom_call.1} parent=11 // pred_fallthru
          _
        // Predicated region
        $region29: #{tpu_custom_call.1} parent=11 // pred_check
          %p468 = pneg %p184
        $region30: #{tpu_custom_call.1} parent=11 // pred_check_branch
          %470 = sbr.rel (%p468) target = $region32
        $region31: #{tpu_custom_call.1} parent=11 // pred_region
          _
        $region32: #{tpu_custom_call.1} parent=11 // pred_fallthru
          _
        // Predicated region
        $region33: #{tpu_custom_call.1} parent=11 // pred_check
          %p471 = pneg %p205
        $region34: #{tpu_custom_call.1} parent=11 // pred_check_branch
          %473 = sbr.rel (%p471) target = $region36
        $region35: #{tpu_custom_call.1} parent=11 // pred_region
          _
        $region36: #{tpu_custom_call.1} parent=11 // pred_fallthru
          _
        // Predicated region
        $region37: #{tpu_custom_call.1} parent=11 // pred_check
          %p474 = pneg %p226
        $region38: #{tpu_custom_call.1} parent=11 // pred_check_branch
          %476 = sbr.rel (%p474) target = $region40
        $region39: #{tpu_custom_call.1} parent=11 // pred_region
          _
        $region40: #{tpu_custom_call.1} parent=11 // pred_fallthru
          _
        // Predicated region
        $region41: #{tpu_custom_call.1} parent=11 // pred_check
          %p477 = pneg %p247
        $region42: #{tpu_custom_call.1} parent=11 // pred_check_branch
          %479 = sbr.rel (%p477) target = $region44
        $region43: #{tpu_custom_call.1} parent=11 // pred_region
          _
        $region44: #{tpu_custom_call.1} parent=11 // pred_fallthru
          _
        // Predicated region
        $region45: #{tpu_custom_call.1} parent=11 // pred_check
          %p480 = pneg %p268
        $region46: #{tpu_custom_call.1} parent=11 // pred_check_branch
          %482 = sbr.rel (%p480) target = $region48
        $region47: #{tpu_custom_call.1} parent=11 // pred_region
          _
        $region48: #{tpu_custom_call.1} parent=11 // pred_fallthru
          _
        // Predicated region
        $region49: #{tpu_custom_call.1} parent=11 // pred_check
          %p483 = pneg %p289
        $region50: #{tpu_custom_call.1} parent=11 // pred_check_branch
          %485 = sbr.rel (%p483) target = $region52
        $region51: #{tpu_custom_call.1} parent=11 // pred_region
          _
        $region52: #{tpu_custom_call.1} parent=11 // pred_fallthru
          _
        // Predicated region
        $region53: #{tpu_custom_call.1} parent=11 // pred_check
          %p486 = pneg %p310
        $region54: #{tpu_custom_call.1} parent=11 // pred_check_branch
          %488 = sbr.rel (%p486) target = $region56
        $region55: #{tpu_custom_call.1} parent=11 // pred_region
          _
        $region56: #{tpu_custom_call.1} parent=11 // pred_fallthru
          _
        // Predicated region
        $region57: #{tpu_custom_call.1} parent=11 // pred_check
          %p489 = pneg %p331
        $region58: #{tpu_custom_call.1} parent=11 // pred_check_branch
          %491 = sbr.rel (%p489) target = $region60
        $region59: #{tpu_custom_call.1} parent=11 // pred_region
          _
        $region60: #{tpu_custom_call.1} parent=11 // pred_fallthru
          _
        // Predicated region
        $region61: #{tpu_custom_call.1} parent=11 // pred_check
          %p492 = pneg %p352
        $region62: #{tpu_custom_call.1} parent=11 // pred_check_branch
          %494 = sbr.rel (%p492) target = $region64
        $region63: #{tpu_custom_call.1} parent=11 // pred_region
          _
        $region64: #{tpu_custom_call.1} parent=11 // pred_fallthru
          _
        // Predicated region
        $region65: #{tpu_custom_call.1} parent=11 // pred_check
          %p495 = pneg %p373
        $region66: #{tpu_custom_call.1} parent=11 // pred_check_branch
          %497 = sbr.rel (%p495) target = $region68
        $region67: #{tpu_custom_call.1} parent=11 // pred_region
          _
        $region68: #{tpu_custom_call.1} parent=11 // pred_fallthru
          _
        // Predicated region
        $region69: #{tpu_custom_call.1} parent=11 // pred_check
          %p498 = pneg %p394
        $region70: #{tpu_custom_call.1} parent=11 // pred_check_branch
          %500 = sbr.rel (%p498) target = $region72
        $region71: #{tpu_custom_call.1} parent=11 // pred_region
          _
        $region72: #{tpu_custom_call.1} parent=11 // pred_fallthru
          _
        // Predicated region
        $region73: #{tpu_custom_call.1} parent=11 // pred_check
          %p501 = pneg %p415
        $region74: #{tpu_custom_call.1} parent=11 // pred_check_branch
          %503 = sbr.rel (%p501) target = $region76
        $region75: #{tpu_custom_call.1} parent=11 // pred_region
          _
        $region76: #{tpu_custom_call.1} parent=11 // pred_fallthru
          _
      $region12: #{tpu_custom_call.1} parent=5 // pred_fallthru
        _
      %p504 = scmp.lt.s32.totalorder %s27, 2
      // Predicated region
      $region77: #{tpu_custom_call.1} parent=5 // pred_check
        %p505 = pneg %p504
      $region78: #{tpu_custom_call.1} parent=5 // pred_check_branch
        %507 = sbr.rel (%p505) target = $region80
      $region79: #{tpu_custom_call.1} parent=5 // pred_region
        // Predicated region
        $region81: #{tpu_custom_call.1} parent=79 // pred_check
          %p508 = pneg %p47
        $region82: #{tpu_custom_call.1} parent=79 // pred_check_branch
          %510 = sbr.rel (%p508) target = $region84
        $region83: #{tpu_custom_call.1} parent=79 // pred_region
          %p511 = scmp.lt.s32.totalorder %s27, 1
          %s512 = scalar_select %p511, %s27, 1
          %s513 = smul.addr %s512, 8
          %s514 = scalar_lea.vmem %s0, %s513
        $region84: #{tpu_custom_call.1} parent=79 // pred_fallthru
          _
        // Predicated region
        $region85: #{tpu_custom_call.1} parent=79 // pred_check
          %p515 = pneg %p73
        $region86: #{tpu_custom_call.1} parent=79 // pred_check_branch
          %517 = sbr.rel (%p515) target = $region88
        $region87: #{tpu_custom_call.1} parent=79 // pred_region
          %p518 = scmp.lt.s32.totalorder %s27, 1
          %s519 = scalar_select %p518, %s27, 1
          %s520 = scalar_lea.vmem %s1, %s519
        $region88: #{tpu_custom_call.1} parent=79 // pred_fallthru
          _
      $region80: #{tpu_custom_call.1} parent=5 // pred_fallthru
        _
      %p521 = scmp.le.s32.totalorder 1, %s27
      %p522 = scmp.lt.s32.totalorder %s27, 3
      %p523 = pnand %p521, %p522
      %p524 = pneg %p523
      // Predicated region
      $region89: #{tpu_custom_call.1} parent=5 // pred_check
        _
      $region90: #{tpu_custom_call.1} parent=5 // pred_check_branch
        %526 = sbr.rel (%p523) target = $region92
      $region91: #{tpu_custom_call.1} parent=5 // pred_region
        %s527 = ssub.s32 %s27, 1
        %p528 = scmp.lt.s32.totalorder %s32, 1
        %s529 = scalar_select %p528, %s32, 1
        %s530 = smul.addr %s529, 8
        %s531 = scalar_lea.vmem %s0, %s530
        %p532 = pneg %p53
        %p533 = pneg %p50
        %p534 = scmp.lt.s32.totalorder %s32, 1
        %s535 = scalar_select %p534, %s32, 1
        %s536 = scalar_lea.vmem %s1, %s535
        %p537 = pneg %p79
        %p538 = pneg %p76
        %p539 = pneg %p100
        %p540 = pneg %p97
        %p541 = pneg %p121
        %p542 = pneg %p118
        %p543 = pneg %p142
        %p544 = pneg %p139
        %p545 = pneg %p163
        %p546 = pneg %p160
        %p547 = pneg %p184
        %p548 = pneg %p181
        %p549 = pneg %p205
        %p550 = pneg %p202
        %p551 = pneg %p226
        %p552 = pneg %p223
        %p553 = pneg %p247
        %p554 = pneg %p244
        %p555 = pneg %p268
        %p556 = pneg %p265
        %p557 = pneg %p289
        %p558 = pneg %p286
        %p559 = pneg %p310
        %p560 = pneg %p307
        %p561 = pneg %p331
        %p562 = pneg %p328
        %p563 = pneg %p352
        %p564 = pneg %p349
        %p565 = pneg %p373
        %p566 = pneg %p370
        %p567 = pneg %p394
        %p568 = pneg %p391
        %p569 = pneg %p415
        %p570 = pneg %p412
        %p571 = pneg %p441
        %p572 = pneg %p438
        %s573 = sand.u32 %s428, 1
        %s574 = scalar_lea.sflag [#allocation5], %s573
        %s575 = sand.u32 %s428, 1
        %s576 = scalar_lea.vmem [#allocation4], %s575
        %p577 = scmp.lt.s32.totalorder %s32, 1
        %s578 = scalar_select %p577, %s32, 1
        %s579 = smul.addr %s578, 8
        %s580 = scalar_lea.vmem %s0, %s579
        %p581 = scmp.lt.s32.totalorder %s32, 1
        %s582 = scalar_select %p581, %s32, 1
        %s583 = scalar_lea.vmem %s1, %s582
        %v584 = vld [vmem:[%s580] sm:$0xff]
        %v585 = vlaneseq
        %v586 = vand.u32 %v585, 127
        %587 = vset.pattern.permute.xlu0 0
        %588 = vperm.xlu0 %587, %v584
        %v589 = vpop.permute.xlu0 %588
        %vm590 = vcmp.eq.s32.totalorder %v586, %v589
        %v591 = vsel %vm590, 1, 0
        %v592 = vcvt.s32.f32 %v591
        %v593 = vld [vmem:[%s2] sm:$0xff]
        %v594 = vld [vmem:[%s2 + $0x8] sm:$0xff]
        %v595 = vld [vmem:[%s2 + $0x10] sm:$0xff]
        %v596 = vld [vmem:[%s2 + $0x18] sm:$0xff]
        %v597 = vld [vmem:[%s2 + $0x20] sm:$0xff]
        %v598 = vld [vmem:[%s2 + $0x28] sm:$0xff]
        %v599 = vld [vmem:[%s2 + $0x30] sm:$0xff]
        %v600 = vld [vmem:[%s2 + $0x38] sm:$0xff]
        %v601 = vld [vmem:[%s2 + $0x40] sm:$0xff]
        %v602 = vld [vmem:[%s2 + $0x48] sm:$0xff]
        %v603 = vld [vmem:[%s2 + $0x50] sm:$0xff]
        %v604 = vld [vmem:[%s2 + $0x58] sm:$0xff]
        %v605 = vld [vmem:[%s2 + $0x60] sm:$0xf]
        %v606 = vld [vmem:[%s3] sm:$0xff]
        %vm607 = vcmask 818176
        %v609 = vsel %vm607, %v592, 0
        %vm611 = vcmask 1043456
        %v613 = vsel %vm611, %v605, 0
        %615 = vmatpush.msra.mxu0 0.0
        %616 = vmatpush.msra.mxu0 0.0
        %617 = vmatpush.msra.mxu0 0.0
        %618 = vmatpush.msra.mxu0 %v613
        %619 = vmatpush.msra.mxu0 %v604
        %620 = vmatpush.msra.mxu0 %v603
        %621 = vmatpush.msra.mxu0 %v602
        %622 = vmatpush.msra.mxu0 %v601
        %623 = vmatpush.msra.mxu0 %v600
        %624 = vmatpush.msra.mxu0 %v599
        %625 = vmatpush.msra.mxu0 %v598
        %626 = vmatpush.msra.mxu0 %v597
        %627 = vmatpush.msra.mxu0 %v596
        %628 = vmatpush.msra.mxu0 %v595
        %629 = vmatpush.msra.mxu0 %v594
        %630 = vmatpush.msra.mxu0 %v593
        %631 = vmatmul.f32.gmra.mxu0 %v609
        %v632 = vpop.f32.mrf.mxu0
        %v633 = vadd.f32 %v606, %v632
        %634 = vdwg.mxu0
        %v635 = vld [vmem:[%s4] sm:$0x1]
        %v636 = vld [vmem:[%s5] sm:$0x1]
        %vm637 = vcmask 261120
        %v638 = vsel %vm637, %v633, 0.0
        %639 = vadd.xlane.f32.xlu0 %v638
        %v640 = vpop.xlane.xlu0 %639
        %v641 = vrcp.pop 32.0
        %v642 = vmul.f32 32.0, %v641
        %v643 = vsub.f32 1.0, %v642
        %v644 = vmul.f32 %v641, %v643
        %v645 = vadd.f32 %v641, %v644
        %vm646 = vweird.f32 %v641
        %v647 = vsel %vm646, %v641, %v645
        %v648 = vmul.f32 %v640, %v647
        %v649 = vsub.f32 %v633, %v648
        %v650 = vmul.f32 %v649, %v649
        %v651 = vsel %vm637, %v650, 0.0
        %652 = vadd.xlane.f32.xlu0 %v651
        %v653 = vpop.xlane.xlu0 %652
        %v654 = vmul.f32 %v653, %v647
        %v655 = vadd.f32 %v654, 1e-12
        %v656 = vrsqrt.pop %v655
        %v657 = vmul.f32 %v656, %v655
        %v658 = vmul.f32 %v657, %v656
        %v659 = vmul.f32 0.5, %v658
        %v660 = vsub.f32 1.5, %v659
        %v661 = vmul.f32 %v656, %v660
        %vm662 = vweird.f32 %v655
        %vm663 = vweird.f32 %v656
        %vm664 = vmor %vm662, %vm663
        %v665 = vsel %vm664, %v656, %v661
        %v666 = vmul.f32 %v649, %v665
        %v668 = vperm.slane %v635, 0
        %v670 = vmul.f32 %v666, %v668
        %v672 = vperm.slane %v636, 0
        %v674 = vadd.f32 %v670, %v672
        %v675 = vld [vmem:[%s583] sm:$0x1]
        %vm676 = vcmp.gt.s32.totalorder %v675, 0
        %v677 = vsel %vm676, 0.0, -1e+30
        %v678 = vld [vmem:[%s6] sm:$0xff]
        %v679 = vld [vmem:[%s6 + $0x8] sm:$0xff]
        %v680 = vld [vmem:[%s6 + $0x10] sm:$0xff]
        %v681 = vld [vmem:[%s6 + $0x18] sm:$0xff]
        %v682 = vld [vmem:[%s7] sm:$0x1]
        %v684 = vperm.slane %v682, 0
        %v687 = vsel %vm637, %v674, 0
        %689 = vmatpush.msra.mxu0 0.0
        %690 = vmatpush.msra.mxu0 0.0
        %691 = vmatpush.msra.mxu0 0.0
        %692 = vmatpush.msra.mxu0 0.0
        %693 = vmatpush.msra.mxu0 0.0
        %694 = vmatpush.msra.mxu0 0.0
        %695 = vmatpush.msra.mxu0 0.0
        %696 = vmatpush.msra.mxu0 0.0
        %697 = vmatpush.msra.mxu0 0.0
        %698 = vmatpush.msra.mxu0 0.0
        %699 = vmatpush.msra.mxu0 0.0
        %700 = vmatpush.msra.mxu0 0.0
        %701 = vmatpush.msra.mxu0 %v681
        %702 = vmatpush.msra.mxu0 %v680
        %703 = vmatpush.msra.mxu0 %v679
        %704 = vmatpush.msra.mxu0 %v678
        %705 = vmatmul.f32.gmra.mxu0 %v687
        %v706 = vpop.f32.mrf.mxu0
        %v707 = vadd.f32 %v684, %v706
        %708 = vdwg.mxu0
        %710 = vrot.lane.b32.xlu0 %v707, 96
        %v711 = vpop.permute.xlu0 %710
        %vm712 = vcmask 64512
        %v713 = vsel %vm712, %v707, 0
        %v715 = vsel %vm712, %v711, 0
        %717 = vmatpush.xpose.msra.mxu0 0.0
        %718 = vmatpush.xpose.msra.mxu0 0.0
        %719 = vmatpush.xpose.msra.mxu0 0.0
        %720 = vmatpush.xpose.msra.mxu0 0.0
        %721 = vmatpush.xpose.msra.mxu0 0.0
        %722 = vmatpush.xpose.msra.mxu0 0.0
        %723 = vmatpush.xpose.msra.mxu0 0.0
        %724 = vmatpush.xpose.msra.mxu0 0.0
        %725 = vmatpush.xpose.msra.mxu0 0.0
        %726 = vmatpush.xpose.msra.mxu0 0.0
        %727 = vmatpush.xpose.msra.mxu0 0.0
        %728 = vmatpush.xpose.msra.mxu0 0.0
        %729 = vmatpush.xpose.msra.mxu0 0.0
        %730 = vmatpush.xpose.msra.mxu0 0.0
        %731 = vmatpush.xpose.msra.mxu0 0.0
        %732 = vmatpush.xpose.msra.mxu0 %v715
        %733 = vmatmul.f32.gmra.mxu0 %v713
        %v734 = vpop.f32.mrf.mxu0
        %v735 = vadd.f32 0.0, %v734
        %736 = vdwg.mxu0
        %v737 = vmul.f32 %v735, 0.35355338
        %v739 = vperm.slane %v677, 0
        %v741 = vadd.f32 %v737, %v739
        %742 = vst.msk [vmem:[#allocation2] sm:$0xff] %vm712, %v741
        %743 = vrot.lane.b32.xlu0 %v707, 120
        %v744 = vpop.permute.xlu0 %743
        %745 = vrot.lane.b32.xlu0 %v707, 88
        %v746 = vpop.permute.xlu0 %745
        %v747 = vsel %vm712, %v744, 0
        %v749 = vsel %vm712, %v746, 0
        %751 = vmatpush.xpose.msra.mxu0 0.0
        %752 = vmatpush.xpose.msra.mxu0 0.0
        %753 = vmatpush.xpose.msra.mxu0 0.0
        %754 = vmatpush.xpose.msra.mxu0 0.0
        %755 = vmatpush.xpose.msra.mxu0 0.0
        %756 = vmatpush.xpose.msra.mxu0 0.0
        %757 = vmatpush.xpose.msra.mxu0 0.0
        %758 = vmatpush.xpose.msra.mxu0 0.0
        %759 = vmatpush.xpose.msra.mxu0 0.0
        %760 = vmatpush.xpose.msra.mxu0 0.0
        %761 = vmatpush.xpose.msra.mxu0 0.0
        %762 = vmatpush.xpose.msra.mxu0 0.0
        %763 = vmatpush.xpose.msra.mxu0 0.0
        %764 = vmatpush.xpose.msra.mxu0 0.0
        %765 = vmatpush.xpose.msra.mxu0 0.0
        %766 = vmatpush.xpose.msra.mxu0 %v749
        %767 = vmatmul.f32.gmra.mxu0 %v747
        %v768 = vpop.f32.mrf.mxu0
        %v769 = vadd.f32 0.0, %v768
        %770 = vdwg.mxu0
        %v771 = vmul.f32 %v769, 0.35355338
        %v772 = vadd.f32 %v771, %v739
        %773 = vst.msk [vmem:[#allocation2 + $0x8] sm:$0xff] %vm712, %v772
        %774 = vrot.lane.b32.xlu0 %v707, 112
        %v775 = vpop.permute.xlu0 %774
        %776 = vrot.lane.b32.xlu0 %v707, 80
        %v777 = vpop.permute.xlu0 %776
        %v778 = vsel %vm712, %v775, 0
        %v780 = vsel %vm712, %v777, 0
        %782 = vmatpush.xpose.msra.mxu0 0.0
        %783 = vmatpush.xpose.msra.mxu0 0.0
        %784 = vmatpush.xpose.msra.mxu0 0.0
        %785 = vmatpush.xpose.msra.mxu0 0.0
        %786 = vmatpush.xpose.msra.mxu0 0.0
        %787 = vmatpush.xpose.msra.mxu0 0.0
        %788 = vmatpush.xpose.msra.mxu0 0.0
        %789 = vmatpush.xpose.msra.mxu0 0.0
        %790 = vmatpush.xpose.msra.mxu0 0.0
        %791 = vmatpush.xpose.msra.mxu0 0.0
        %792 = vmatpush.xpose.msra.mxu0 0.0
        %793 = vmatpush.xpose.msra.mxu0 0.0
        %794 = vmatpush.xpose.msra.mxu0 0.0
        %795 = vmatpush.xpose.msra.mxu0 0.0
        %796 = vmatpush.xpose.msra.mxu0 0.0
        %797 = vmatpush.xpose.msra.mxu0 %v780
        %798 = vmatmul.f32.gmra.mxu0 %v778
        %v799 = vpop.f32.mrf.mxu0
        %v800 = vadd.f32 0.0, %v799
        %801 = vdwg.mxu0
        %v802 = vmul.f32 %v800, 0.35355338
        %v803 = vadd.f32 %v802, %v739
        %804 = vst.msk [vmem:[#allocation2 + $0x10] sm:$0xff] %vm712, %v803
        %805 = vrot.lane.b32.xlu0 %v707, 104
        %v806 = vpop.permute.xlu0 %805
        %807 = vrot.lane.b32.xlu0 %v707, 72
        %v808 = vpop.permute.xlu0 %807
        %v809 = vsel %vm712, %v806, 0
        %v811 = vsel %vm712, %v808, 0
        %813 = vmatpush.xpose.msra.mxu0 0.0
        %814 = vmatpush.xpose.msra.mxu0 0.0
        %815 = vmatpush.xpose.msra.mxu0 0.0
        %816 = vmatpush.xpose.msra.mxu0 0.0
        %817 = vmatpush.xpose.msra.mxu0 0.0
        %818 = vmatpush.xpose.msra.mxu0 0.0
        %819 = vmatpush.xpose.msra.mxu0 0.0
        %820 = vmatpush.xpose.msra.mxu0 0.0
        %821 = vmatpush.xpose.msra.mxu0 0.0
        %822 = vmatpush.xpose.msra.mxu0 0.0
        %823 = vmatpush.xpose.msra.mxu0 0.0
        %824 = vmatpush.xpose.msra.mxu0 0.0
        %825 = vmatpush.xpose.msra.mxu0 0.0
        %826 = vmatpush.xpose.msra.mxu0 0.0
        %827 = vmatpush.xpose.msra.mxu0 0.0
        %828 = vmatpush.xpose.msra.mxu0 %v811
        %829 = vmatmul.f32.gmra.mxu0 %v809
        %v830 = vpop.f32.mrf.mxu0
        %v831 = vadd.f32 0.0, %v830
        %832 = vdwg.mxu0
        %v833 = vmul.f32 %v831, 0.35355338
        %v834 = vadd.f32 %v833, %v739
        %835 = vst.msk [vmem:[#allocation2 + $0x18] sm:$0xff] %vm712, %v834
        %v836 = vld [vmem:[#allocation2] sm:$0xff]
        %v837 = vld [vmem:[#allocation2 + $0x8] sm:$0xff]
        %v838 = vld [vmem:[#allocation2 + $0x10] sm:$0xff]
        %v839 = vld [vmem:[#allocation2 + $0x18] sm:$0xff]
        %v840 = vsel %vm712, %v836, -inf
        %841 = vmax.xlane.f32.xlu0 %v840
        %v842 = vpop.xlane.xlu0 %841
        %v843 = vsel %vm712, %v837, -inf
        %844 = vmax.xlane.f32.xlu0 %v843
        %v845 = vpop.xlane.xlu0 %844
        %v846 = vsel %vm712, %v838, -inf
        %847 = vmax.xlane.f32.xlu0 %v846
        %v848 = vpop.xlane.xlu0 %847
        %v849 = vsel %vm712, %v839, -inf
        %850 = vmax.xlane.f32.xlu0 %v849
        %v851 = vpop.xlane.xlu0 %850
        %v852 = vsub.f32 %v836, %v842
        %v853 = vsub.f32 %v837, %v845
        %v854 = vsub.f32 %v838, %v848
        %v855 = vsub.f32 %v839, %v851
        %v856 = vmul.f32 %v852, 1.442695
        %v857 = vpow.pop %v856
        %v858 = vmul.f32 %v853, 1.442695
        %v859 = vpow.pop %v858
        %v860 = vmul.f32 %v854, 1.442695
        %v861 = vpow.pop %v860
        %v862 = vmul.f32 %v855, 1.442695
        %v863 = vpow.pop %v862
        %v864 = vsel %vm712, %v857, 0.0
        %865 = vadd.xlane.f32.xlu0 %v864
        %v866 = vpop.xlane.xlu0 %865
        %v867 = vsel %vm712, %v859, 0.0
        %868 = vadd.xlane.f32.xlu0 %v867
        %v869 = vpop.xlane.xlu0 %868
        %v870 = vsel %vm712, %v861, 0.0
        %871 = vadd.xlane.f32.xlu0 %v870
        %v872 = vpop.xlane.xlu0 %871
        %v873 = vsel %vm712, %v863, 0.0
        %874 = vadd.xlane.f32.xlu0 %v873
        %v875 = vpop.xlane.xlu0 %874
        %v876 = vrcp.pop %v866
        %v877 = vrcp.pop %v869
        %v878 = vrcp.pop %v872
        %v879 = vrcp.pop %v875
        %v880 = vmul.f32 %v857, %v876
        %v881 = vmul.f32 %v859, %v877
        %v882 = vmul.f32 %v861, %v878
        %v883 = vmul.f32 %v863, %v879
        %884 = vrot.lane.b32.xlu0 %v707, 64
        %v885 = vpop.permute.xlu0 %884
        %v888 = vsel %vm712, %v880, 0
        %890 = vmatpush.msra.mxu0 0.0
        %891 = vmatpush.msra.mxu0 0.0
        %892 = vmatpush.msra.mxu0 0.0
        %893 = vmatpush.msra.mxu0 0.0
        %894 = vmatpush.msra.mxu0 0.0
        %895 = vmatpush.msra.mxu0 0.0
        %896 = vmatpush.msra.mxu0 0.0
        %897 = vmatpush.msra.mxu0 0.0
        %898 = vmatpush.msra.mxu0 0.0
        %899 = vmatpush.msra.mxu0 0.0
        %900 = vmatpush.msra.mxu0 0.0
        %901 = vmatpush.msra.mxu0 0.0
        %902 = vmatpush.msra.mxu0 0.0
        %903 = vmatpush.msra.mxu0 0.0
        %904 = vmatpush.msra.mxu0 0.0
        %905 = vmatpush.msra.mxu0 %v885
        %906 = vmatmul.f32.gmra.mxu0 %v888
        %v907 = vpop.f32.mrf.mxu0
        %v908 = vadd.f32 0.0, %v907
        %909 = vdwg.mxu0
        %910 = vst.msk [vmem:[#allocation3] sm:$0xff] %vm712, %v908
        %911 = vrot.lane.b32.xlu0 %v707, 56
        %v912 = vpop.permute.xlu0 %911
        %v915 = vsel %vm712, %v881, 0
        %917 = vmatpush.msra.mxu0 0.0
        %918 = vmatpush.msra.mxu0 0.0
        %919 = vmatpush.msra.mxu0 0.0
        %920 = vmatpush.msra.mxu0 0.0
        %921 = vmatpush.msra.mxu0 0.0
        %922 = vmatpush.msra.mxu0 0.0
        %923 = vmatpush.msra.mxu0 0.0
        %924 = vmatpush.msra.mxu0 0.0
        %925 = vmatpush.msra.mxu0 0.0
        %926 = vmatpush.msra.mxu0 0.0
        %927 = vmatpush.msra.mxu0 0.0
        %928 = vmatpush.msra.mxu0 0.0
        %929 = vmatpush.msra.mxu0 0.0
        %930 = vmatpush.msra.mxu0 0.0
        %931 = vmatpush.msra.mxu0 0.0
        %932 = vmatpush.msra.mxu0 %v912
        %933 = vmatmul.f32.gmra.mxu0 %v915
        %v934 = vpop.f32.mrf.mxu0
        %v935 = vadd.f32 0.0, %v934
        %936 = vdwg.mxu0
        %938 = vrot.lane.b32.xlu0 %v935, 8
        %v939 = vpop.permute.xlu0 %938
        %vm941 = vcmask 130112
        %942 = vst.msk [vmem:[#allocation3] sm:$0xff] %vm941, %v939
        %943 = vrot.lane.b32.xlu0 %v707, 48
        %v944 = vpop.permute.xlu0 %943
        %v947 = vsel %vm712, %v882, 0
        %949 = vmatpush.msra.mxu0 0.0
        %950 = vmatpush.msra.mxu0 0.0
        %951 = vmatpush.msra.mxu0 0.0
        %952 = vmatpush.msra.mxu0 0.0
        %953 = vmatpush.msra.mxu0 0.0
        %954 = vmatpush.msra.mxu0 0.0
        %955 = vmatpush.msra.mxu0 0.0
        %956 = vmatpush.msra.mxu0 0.0
        %957 = vmatpush.msra.mxu0 0.0
        %958 = vmatpush.msra.mxu0 0.0
        %959 = vmatpush.msra.mxu0 0.0
        %960 = vmatpush.msra.mxu0 0.0
        %961 = vmatpush.msra.mxu0 0.0
        %962 = vmatpush.msra.mxu0 0.0
        %963 = vmatpush.msra.mxu0 0.0
        %964 = vmatpush.msra.mxu0 %v944
        %965 = vmatmul.f32.gmra.mxu0 %v947
        %v966 = vpop.f32.mrf.mxu0
        %v967 = vadd.f32 0.0, %v966
        %968 = vdwg.mxu0
        %970 = vrot.lane.b32.xlu0 %v967, 16
        %v971 = vpop.permute.xlu0 %970
        %vm973 = vcmask 195712
        %974 = vst.msk [vmem:[#allocation3] sm:$0xff] %vm973, %v971
        %975 = vrot.lane.b32.xlu0 %v707, 40
        %v976 = vpop.permute.xlu0 %975
        %v979 = vsel %vm712, %v883, 0
        %981 = vmatpush.msra.mxu0 0.0
        %982 = vmatpush.msra.mxu0 0.0
        %983 = vmatpush.msra.mxu0 0.0
        %984 = vmatpush.msra.mxu0 0.0
        %985 = vmatpush.msra.mxu0 0.0
        %986 = vmatpush.msra.mxu0 0.0
        %987 = vmatpush.msra.mxu0 0.0
        %988 = vmatpush.msra.mxu0 0.0
        %989 = vmatpush.msra.mxu0 0.0
        %990 = vmatpush.msra.mxu0 0.0
        %991 = vmatpush.msra.mxu0 0.0
        %992 = vmatpush.msra.mxu0 0.0
        %993 = vmatpush.msra.mxu0 0.0
        %994 = vmatpush.msra.mxu0 0.0
        %995 = vmatpush.msra.mxu0 0.0
        %996 = vmatpush.msra.mxu0 %v976
        %997 = vmatmul.f32.gmra.mxu0 %v979
        %v998 = vpop.f32.mrf.mxu0
        %v999 = vadd.f32 0.0, %v998
        %1000 = vdwg.mxu0
        %1002 = vrot.lane.b32.xlu0 %v999, 24
        %v1003 = vpop.permute.xlu0 %1002
        %vm1005 = vcmask 261312
        %1006 = vst.msk [vmem:[#allocation3] sm:$0xff] %vm1005, %v1003
        %v1007 = vld [vmem:[#allocation3] sm:$0xff]
        %v1008 = vld [vmem:[%s8] sm:$0xff]
        %v1009 = vld [vmem:[%s8 + $0x8] sm:$0xff]
        %v1010 = vld [vmem:[%s8 + $0x10] sm:$0xff]
        %v1011 = vld [vmem:[%s8 + $0x18] sm:$0xff]
        %v1012 = vld [vmem:[%s9] sm:$0x1]
        %v1014 = vperm.slane %v1012, 0
        %v1017 = vsel %vm637, %v1007, 0
        %1019 = vmatpush.msra.mxu0 0.0
        %1020 = vmatpush.msra.mxu0 0.0
        %1021 = vmatpush.msra.mxu0 0.0
        %1022 = vmatpush.msra.mxu0 0.0
        %1023 = vmatpush.msra.mxu0 0.0
        %1024 = vmatpush.msra.mxu0 0.0
        %1025 = vmatpush.msra.mxu0 0.0
        %1026 = vmatpush.msra.mxu0 0.0
        %1027 = vmatpush.msra.mxu0 0.0
        %1028 = vmatpush.msra.mxu0 0.0
        %1029 = vmatpush.msra.mxu0 0.0
        %1030 = vmatpush.msra.mxu0 0.0
        %1031 = vmatpush.msra.mxu0 %v1011
        %1032 = vmatpush.msra.mxu0 %v1010
        %1033 = vmatpush.msra.mxu0 %v1009
        %1034 = vmatpush.msra.mxu0 %v1008
        %1035 = vmatmul.f32.gmra.mxu0 %v1017
        %v1036 = vpop.f32.mrf.mxu0
        %v1037 = vadd.f32 %v1014, %v1036
        %1038 = vdwg.mxu0
        %v1039 = vadd.f32 %v1037, %v674
        %v1040 = vld [vmem:[%s10] sm:$0x1]
        %v1041 = vld [vmem:[%s11] sm:$0x1]
        %v1042 = vsel %vm637, %v1039, 0.0
        %1043 = vadd.xlane.f32.xlu0 %v1042
        %v1044 = vpop.xlane.xlu0 %1043
        %v1045 = vmul.f32 %v1044, %v647
        %v1046 = vsub.f32 %v1039, %v1045
        %v1047 = vmul.f32 %v1046, %v1046
        %v1048 = vsel %vm637, %v1047, 0.0
        %1049 = vadd.xlane.f32.xlu0 %v1048
        %v1050 = vpop.xlane.xlu0 %1049
        %v1051 = vmul.f32 %v1050, %v647
        %v1052 = vadd.f32 %v1051, 1e-12
        %v1053 = vrsqrt.pop %v1052
        %v1054 = vmul.f32 %v1053, %v1052
        %v1055 = vmul.f32 %v1054, %v1053
        %v1056 = vmul.f32 0.5, %v1055
        %v1057 = vsub.f32 1.5, %v1056
        %v1058 = vmul.f32 %v1053, %v1057
        %vm1059 = vweird.f32 %v1052
        %vm1060 = vweird.f32 %v1053
        %vm1061 = vmor %vm1059, %vm1060
        %v1062 = vsel %vm1061, %v1053, %v1058
        %v1063 = vmul.f32 %v1046, %v1062
        %v1065 = vperm.slane %v1040, 0
        %v1067 = vmul.f32 %v1063, %v1065
        %v1069 = vperm.slane %v1041, 0
        %v1071 = vadd.f32 %v1067, %v1069
        %v1072 = vld [vmem:[%s12] sm:$0xff]
        %v1073 = vld [vmem:[%s12 + $0x8] sm:$0xff]
        %v1074 = vld [vmem:[%s12 + $0x10] sm:$0xff]
        %v1075 = vld [vmem:[%s12 + $0x18] sm:$0xff]
        %v1076 = vld [vmem:[%s13] sm:$0x1]
        %v1078 = vperm.slane %v1076, 0
        %v1081 = vsel %vm637, %v1071, 0
        %1083 = vmatpush.msra.mxu0 0.0
        %1084 = vmatpush.msra.mxu0 0.0
        %1085 = vmatpush.msra.mxu0 0.0
        %1086 = vmatpush.msra.mxu0 0.0
        %1087 = vmatpush.msra.mxu0 0.0
        %1088 = vmatpush.msra.mxu0 0.0
        %1089 = vmatpush.msra.mxu0 0.0
        %1090 = vmatpush.msra.mxu0 0.0
        %1091 = vmatpush.msra.mxu0 0.0
        %1092 = vmatpush.msra.mxu0 0.0
        %1093 = vmatpush.msra.mxu0 0.0
        %1094 = vmatpush.msra.mxu0 0.0
        %1095 = vmatpush.msra.mxu0 %v1075
        %1096 = vmatpush.msra.mxu0 %v1074
        %1097 = vmatpush.msra.mxu0 %v1073
        %1098 = vmatpush.msra.mxu0 %v1072
        %1099 = vmatmul.f32.gmra.mxu0 %v1081
        %v1100 = vpop.f32.mrf.mxu0
        %v1101 = vadd.f32 %v1078, %v1100
        %1102 = vdwg.mxu0
        %v1103 = vmul.f32 %v1101, %v1101
        %v1104 = vmul.f32 %v1101, %v1103
        %v1105 = vmul.f32 %v1104, 0.044715
        %v1106 = vadd.f32 %v1101, %v1105
        %v1107 = vmul.f32 %v1106, 0.7978846
        %v1108 = vtanh.pop %v1107
        %v1109 = vadd.f32 %v1108, 1.0
        %v1110 = vmul.f32 %v1109, 0.5
        %v1111 = vmul.f32 %v1101, %v1110
        %v1112 = vld [vmem:[%s14] sm:$0xff]
        %v1113 = vld [vmem:[%s14 + $0x8] sm:$0xff]
        %v1114 = vld [vmem:[%s14 + $0x10] sm:$0xff]
        %v1115 = vld [vmem:[%s14 + $0x18] sm:$0xff]
        %v1116 = vld [vmem:[%s14 + $0x20] sm:$0xff]
        %v1117 = vld [vmem:[%s14 + $0x28] sm:$0xff]
        %v1118 = vld [vmem:[%s14 + $0x30] sm:$0xff]
        %v1119 = vld [vmem:[%s14 + $0x38] sm:$0xff]
        %v1120 = vld [vmem:[%s15] sm:$0x1]
        %v1122 = vperm.slane %v1120, 0
        %vm1124 = vcmask 523264
        %v1126 = vsel %vm1124, %v1111, 0
        %1128 = vmatpush.msra.mxu0 0.0
        %1129 = vmatpush.msra.mxu0 0.0
        %1130 = vmatpush.msra.mxu0 0.0
        %1131 = vmatpush.msra.mxu0 0.0
        %1132 = vmatpush.msra.mxu0 0.0
        %1133 = vmatpush.msra.mxu0 0.0
        %1134 = vmatpush.msra.mxu0 0.0
        %1135 = vmatpush.msra.mxu0 0.0
        %1136 = vmatpush.msra.mxu0 %v1119
        %1137 = vmatpush.msra.mxu0 %v1118
        %1138 = vmatpush.msra.mxu0 %v1117
        %1139 = vmatpush.msra.mxu0 %v1116
        %1140 = vmatpush.msra.mxu0 %v1115
        %1141 = vmatpush.msra.mxu0 %v1114
        %1142 = vmatpush.msra.mxu0 %v1113
        %1143 = vmatpush.msra.mxu0 %v1112
        %1144 = vmatmul.f32.gmra.mxu0 %v1126
        %v1145 = vpop.f32.mrf.mxu0
        %v1146 = vadd.f32 %v1122, %v1145
        %1147 = vdwg.mxu0
        %v1148 = vadd.f32 %v1146, %v1071
        %v1149 = vld [vmem:[%s16] sm:$0x1]
        %v1150 = vld [vmem:[%s17] sm:$0x1]
        %v1151 = vsel %vm637, %v1148, 0.0
        %1152 = vadd.xlane.f32.xlu0 %v1151
        %v1153 = vpop.xlane.xlu0 %1152
        %v1154 = vmul.f32 %v1153, %v647
        %v1155 = vsub.f32 %v1148, %v1154
        %v1156 = vmul.f32 %v1155, %v1155
        %v1157 = vsel %vm637, %v1156, 0.0
        %1158 = vadd.xlane.f32.xlu0 %v1157
        %v1159 = vpop.xlane.xlu0 %1158
        %v1160 = vmul.f32 %v1159, %v647
        %v1161 = vadd.f32 %v1160, 1e-12
        %v1162 = vrsqrt.pop %v1161
        %v1163 = vmul.f32 %v1162, %v1161
        %v1164 = vmul.f32 %v1163, %v1162
        %v1165 = vmul.f32 0.5, %v1164
        %v1166 = vsub.f32 1.5, %v1165
        %v1167 = vmul.f32 %v1162, %v1166
        %vm1168 = vweird.f32 %v1161
        %vm1169 = vweird.f32 %v1162
        %vm1170 = vmor %vm1168, %vm1169
        %v1171 = vsel %vm1170, %v1162, %v1167
        %v1172 = vmul.f32 %v1155, %v1171
        %v1174 = vperm.slane %v1149, 0
        %v1176 = vmul.f32 %v1172, %v1174
        %v1178 = vperm.slane %v1150, 0
        %v1180 = vadd.f32 %v1176, %v1178
        %s1181 = scalar_lea.vmem %s6, 32
        %v1182 = vld [vmem:[%s1181] sm:$0xff]
        %v1183 = vld [vmem:[%s1181 + $0x8] sm:$0xff]
        %v1184 = vld [vmem:[%s1181 + $0x10] sm:$0xff]
        %v1185 = vld [vmem:[%s1181 + $0x18] sm:$0xff]
        %s1186 = scalar_lea.vmem %s7, 1
        %v1187 = vld [vmem:[%s1186] sm:$0x1]
        %v1189 = vperm.slane %v1187, 0
        %v1192 = vsel %vm637, %v1180, 0
        %1194 = vmatpush.msra.mxu0 0.0
        %1195 = vmatpush.msra.mxu0 0.0
        %1196 = vmatpush.msra.mxu0 0.0
        %1197 = vmatpush.msra.mxu0 0.0
        %1198 = vmatpush.msra.mxu0 0.0
        %1199 = vmatpush.msra.mxu0 0.0
        %1200 = vmatpush.msra.mxu0 0.0
        %1201 = vmatpush.msra.mxu0 0.0
        %1202 = vmatpush.msra.mxu0 0.0
        %1203 = vmatpush.msra.mxu0 0.0
        %1204 = vmatpush.msra.mxu0 0.0
        %1205 = vmatpush.msra.mxu0 0.0
        %1206 = vmatpush.msra.mxu0 %v1185
        %1207 = vmatpush.msra.mxu0 %v1184
        %1208 = vmatpush.msra.mxu0 %v1183
        %1209 = vmatpush.msra.mxu0 %v1182
        %1210 = vmatmul.f32.gmra.mxu0 %v1192
        %v1211 = vpop.f32.mrf.mxu0
        %v1212 = vadd.f32 %v1189, %v1211
        %1213 = vdwg.mxu0
        %1215 = vrot.lane.b32.xlu0 %v1212, 96
        %v1216 = vpop.permute.xlu0 %1215
        %v1217 = vsel %vm712, %v1212, 0
        %v1219 = vsel %vm712, %v1216, 0
        %1221 = vmatpush.xpose.msra.mxu0 0.0
        %1222 = vmatpush.xpose.msra.mxu0 0.0
        %1223 = vmatpush.xpose.msra.mxu0 0.0
        %1224 = vmatpush.xpose.msra.mxu0 0.0
        %1225 = vmatpush.xpose.msra.mxu0 0.0
        %1226 = vmatpush.xpose.msra.mxu0 0.0
        %1227 = vmatpush.xpose.msra.mxu0 0.0
        %1228 = vmatpush.xpose.msra.mxu0 0.0
        %1229 = vmatpush.xpose.msra.mxu0 0.0
        %1230 = vmatpush.xpose.msra.mxu0 0.0
        %1231 = vmatpush.xpose.msra.mxu0 0.0
        %1232 = vmatpush.xpose.msra.mxu0 0.0
        %1233 = vmatpush.xpose.msra.mxu0 0.0
        %1234 = vmatpush.xpose.msra.mxu0 0.0
        %1235 = vmatpush.xpose.msra.mxu0 0.0
        %1236 = vmatpush.xpose.msra.mxu0 %v1219
        %1237 = vmatmul.f32.gmra.mxu0 %v1217
        %v1238 = vpop.f32.mrf.mxu0
        %v1239 = vadd.f32 0.0, %v1238
        %1240 = vdwg.mxu0
        %v1241 = vmul.f32 %v1239, 0.35355338
        %v1242 = vadd.f32 %v1241, %v677
        %vm1243 = vcmask 57344
        %1244 = vst.msk [vmem:[#allocation2] sm:$0x1] %vm1243, %v1242
        %1245 = vrot.lane.b32.xlu0 %v1212, 120
        %v1246 = vpop.permute.xlu0 %1245
        %1247 = vrot.lane.b32.xlu0 %v1212, 88
        %v1248 = vpop.permute.xlu0 %1247
        %v1249 = vsel %vm712, %v1246, 0
        %v1251 = vsel %vm712, %v1248, 0
        %1253 = vmatpush.xpose.msra.mxu0 0.0
        %1254 = vmatpush.xpose.msra.mxu0 0.0
        %1255 = vmatpush.xpose.msra.mxu0 0.0
        %1256 = vmatpush.xpose.msra.mxu0 0.0
        %1257 = vmatpush.xpose.msra.mxu0 0.0
        %1258 = vmatpush.xpose.msra.mxu0 0.0
        %1259 = vmatpush.xpose.msra.mxu0 0.0
        %1260 = vmatpush.xpose.msra.mxu0 0.0
        %1261 = vmatpush.xpose.msra.mxu0 0.0
        %1262 = vmatpush.xpose.msra.mxu0 0.0
        %1263 = vmatpush.xpose.msra.mxu0 0.0
        %1264 = vmatpush.xpose.msra.mxu0 0.0
        %1265 = vmatpush.xpose.msra.mxu0 0.0
        %1266 = vmatpush.xpose.msra.mxu0 0.0
        %1267 = vmatpush.xpose.msra.mxu0 0.0
        %1268 = vmatpush.xpose.msra.mxu0 %v1251
        %1269 = vmatmul.f32.gmra.mxu0 %v1249
        %v1270 = vpop.f32.mrf.mxu0
        %v1271 = vadd.f32 0.0, %v1270
        %1272 = vdwg.mxu0
        %v1273 = vmul.f32 %v1271, 0.35355338
        %v1274 = vadd.f32 %v1273, %v677
        %1275 = vst.msk [vmem:[#allocation2 + $0x1] sm:$0x1] %vm1243, %v1274
        %1276 = vrot.lane.b32.xlu0 %v1212, 112
        %v1277 = vpop.permute.xlu0 %1276
        %1278 = vrot.lane.b32.xlu0 %v1212, 80
        %v1279 = vpop.permute.xlu0 %1278
        %v1280 = vsel %vm712, %v1277, 0
        %v1282 = vsel %vm712, %v1279, 0
        %1284 = vmatpush.xpose.msra.mxu0 0.0
        %1285 = vmatpush.xpose.msra.mxu0 0.0
        %1286 = vmatpush.xpose.msra.mxu0 0.0
        %1287 = vmatpush.xpose.msra.mxu0 0.0
        %1288 = vmatpush.xpose.msra.mxu0 0.0
        %1289 = vmatpush.xpose.msra.mxu0 0.0
        %1290 = vmatpush.xpose.msra.mxu0 0.0
        %1291 = vmatpush.xpose.msra.mxu0 0.0
        %1292 = vmatpush.xpose.msra.mxu0 0.0
        %1293 = vmatpush.xpose.msra.mxu0 0.0
        %1294 = vmatpush.xpose.msra.mxu0 0.0
        %1295 = vmatpush.xpose.msra.mxu0 0.0
        %1296 = vmatpush.xpose.msra.mxu0 0.0
        %1297 = vmatpush.xpose.msra.mxu0 0.0
        %1298 = vmatpush.xpose.msra.mxu0 0.0
        %1299 = vmatpush.xpose.msra.mxu0 %v1282
        %1300 = vmatmul.f32.gmra.mxu0 %v1280
        %v1301 = vpop.f32.mrf.mxu0
        %v1302 = vadd.f32 0.0, %v1301
        %1303 = vdwg.mxu0
        %v1304 = vmul.f32 %v1302, 0.35355338
        %v1305 = vadd.f32 %v1304, %v677
        %1306 = vst.msk [vmem:[#allocation2 + $0x2] sm:$0x1] %vm1243, %v1305
        %1307 = vrot.lane.b32.xlu0 %v1212, 104
        %v1308 = vpop.permute.xlu0 %1307
        %1309 = vrot.lane.b32.xlu0 %v1212, 72
        %v1310 = vpop.permute.xlu0 %1309
        %v1311 = vsel %vm712, %v1308, 0
        %v1313 = vsel %vm712, %v1310, 0
        %1315 = vmatpush.xpose.msra.mxu0 0.0
        %1316 = vmatpush.xpose.msra.mxu0 0.0
        %1317 = vmatpush.xpose.msra.mxu0 0.0
        %1318 = vmatpush.xpose.msra.mxu0 0.0
        %1319 = vmatpush.xpose.msra.mxu0 0.0
        %1320 = vmatpush.xpose.msra.mxu0 0.0
        %1321 = vmatpush.xpose.msra.mxu0 0.0
        %1322 = vmatpush.xpose.msra.mxu0 0.0
        %1323 = vmatpush.xpose.msra.mxu0 0.0
        %1324 = vmatpush.xpose.msra.mxu0 0.0
        %1325 = vmatpush.xpose.msra.mxu0 0.0
        %1326 = vmatpush.xpose.msra.mxu0 0.0
        %1327 = vmatpush.xpose.msra.mxu0 0.0
        %1328 = vmatpush.xpose.msra.mxu0 0.0
        %1329 = vmatpush.xpose.msra.mxu0 0.0
        %1330 = vmatpush.xpose.msra.mxu0 %v1313
        %1331 = vmatmul.f32.gmra.mxu0 %v1311
        %v1332 = vpop.f32.mrf.mxu0
        %v1333 = vadd.f32 0.0, %v1332
        %1334 = vdwg.mxu0
        %v1335 = vmul.f32 %v1333, 0.35355338
        %v1336 = vadd.f32 %v1335, %v677
        %1337 = vst.msk [vmem:[#allocation2 + $0x3] sm:$0x1] %vm1243, %v1336
        %v1338 = vld [vmem:[#allocation2] sm:$0xf]
        %vm1339 = vcmask 60416
        %v1340 = vsel %vm1339, %v1338, -inf
        %1341 = vmax.xlane.f32.xlu0 %v1340
        %v1342 = vpop.xlane.xlu0 %1341
        %v1343 = vsub.f32 %v1338, %v1342
        %v1344 = vmul.f32 %v1343, 1.442695
        %v1345 = vpow.pop %v1344
        %v1346 = vsel %vm1339, %v1345, 0.0
        %1347 = vadd.xlane.f32.xlu0 %v1346
        %v1348 = vpop.xlane.xlu0 %1347
        %v1349 = vrcp.pop %v1348
        %v1350 = vmul.f32 %v1345, %v1349
        %1351 = vrot.lane.b32.xlu0 %v1212, 64
        %v1352 = vpop.permute.xlu0 %1351
        %v1355 = vsel %vm712, %v1350, 0
        %1357 = vmatpush.msra.mxu0 0.0
        %1358 = vmatpush.msra.mxu0 0.0
        %1359 = vmatpush.msra.mxu0 0.0
        %1360 = vmatpush.msra.mxu0 0.0
        %1361 = vmatpush.msra.mxu0 0.0
        %1362 = vmatpush.msra.mxu0 0.0
        %1363 = vmatpush.msra.mxu0 0.0
        %1364 = vmatpush.msra.mxu0 0.0
        %1365 = vmatpush.msra.mxu0 0.0
        %1366 = vmatpush.msra.mxu0 0.0
        %1367 = vmatpush.msra.mxu0 0.0
        %1368 = vmatpush.msra.mxu0 0.0
        %1369 = vmatpush.msra.mxu0 0.0
        %1370 = vmatpush.msra.mxu0 0.0
        %1371 = vmatpush.msra.mxu0 0.0
        %1372 = vmatpush.msra.mxu0 %v1352
        %1373 = vmatmul.f32.gmra.mxu0 %v1355
        %v1374 = vpop.f32.mrf.mxu0
        %v1375 = vadd.f32 0.0, %v1374
        %1376 = vdwg.mxu0
        %1377 = vst.msk [vmem:[#allocation3] sm:$0x1] %vm1243, %v1375
        %v1378 = vrot.slane %v1350, 1
        %1379 = vrot.lane.b32.xlu0 %v1212, 56
        %v1380 = vpop.permute.xlu0 %1379
        %v1382 = vsel %vm712, %v1378, 0
        %1384 = vmatpush.msra.mxu0 0.0
        %1385 = vmatpush.msra.mxu0 0.0
        %1386 = vmatpush.msra.mxu0 0.0
        %1387 = vmatpush.msra.mxu0 0.0
        %1388 = vmatpush.msra.mxu0 0.0
        %1389 = vmatpush.msra.mxu0 0.0
        %1390 = vmatpush.msra.mxu0 0.0
        %1391 = vmatpush.msra.mxu0 0.0
        %1392 = vmatpush.msra.mxu0 0.0
        %1393 = vmatpush.msra.mxu0 0.0
        %1394 = vmatpush.msra.mxu0 0.0
        %1395 = vmatpush.msra.mxu0 0.0
        %1396 = vmatpush.msra.mxu0 0.0
        %1397 = vmatpush.msra.mxu0 0.0
        %1398 = vmatpush.msra.mxu0 0.0
        %1399 = vmatpush.msra.mxu0 %v1380
        %1400 = vmatmul.f32.gmra.mxu0 %v1382
        %v1401 = vpop.f32.mrf.mxu0
        %v1402 = vadd.f32 0.0, %v1401
        %1403 = vdwg.mxu0
        %1405 = vrot.lane.b32.xlu0 %v1402, 8
        %v1406 = vpop.permute.xlu0 %1405
        %vm1408 = vcmask 122944
        %1409 = vst.msk [vmem:[#allocation3] sm:$0x1] %vm1408, %v1406
        %v1410 = vrot.slane %v1350, 2
        %1411 = vrot.lane.b32.xlu0 %v1212, 48
        %v1412 = vpop.permute.xlu0 %1411
        %v1414 = vsel %vm712, %v1410, 0
        %1416 = vmatpush.msra.mxu0 0.0
        %1417 = vmatpush.msra.mxu0 0.0
        %1418 = vmatpush.msra.mxu0 0.0
        %1419 = vmatpush.msra.mxu0 0.0
        %1420 = vmatpush.msra.mxu0 0.0
        %1421 = vmatpush.msra.mxu0 0.0
        %1422 = vmatpush.msra.mxu0 0.0
        %1423 = vmatpush.msra.mxu0 0.0
        %1424 = vmatpush.msra.mxu0 0.0
        %1425 = vmatpush.msra.mxu0 0.0
        %1426 = vmatpush.msra.mxu0 0.0
        %1427 = vmatpush.msra.mxu0 0.0
        %1428 = vmatpush.msra.mxu0 0.0
        %1429 = vmatpush.msra.mxu0 0.0
        %1430 = vmatpush.msra.mxu0 0.0
        %1431 = vmatpush.msra.mxu0 %v1412
        %1432 = vmatmul.f32.gmra.mxu0 %v1414
        %v1433 = vpop.f32.mrf.mxu0
        %v1434 = vadd.f32 0.0, %v1433
        %1435 = vdwg.mxu0
        %1437 = vrot.lane.b32.xlu0 %v1434, 16
        %v1438 = vpop.permute.xlu0 %1437
        %vm1440 = vcmask 188544
        %1441 = vst.msk [vmem:[#allocation3] sm:$0x1] %vm1440, %v1438
        %v1442 = vrot.slane %v1350, 3
        %1443 = vrot.lane.b32.xlu0 %v1212, 40
        %v1444 = vpop.permute.xlu0 %1443
        %v1446 = vsel %vm712, %v1442, 0
        %1448 = vmatpush.msra.mxu0 0.0
        %1449 = vmatpush.msra.mxu0 0.0
        %1450 = vmatpush.msra.mxu0 0.0
        %1451 = vmatpush.msra.mxu0 0.0
        %1452 = vmatpush.msra.mxu0 0.0
        %1453 = vmatpush.msra.mxu0 0.0
        %1454 = vmatpush.msra.mxu0 0.0
        %1455 = vmatpush.msra.mxu0 0.0
        %1456 = vmatpush.msra.mxu0 0.0
        %1457 = vmatpush.msra.mxu0 0.0
        %1458 = vmatpush.msra.mxu0 0.0
        %1459 = vmatpush.msra.mxu0 0.0
        %1460 = vmatpush.msra.mxu0 0.0
        %1461 = vmatpush.msra.mxu0 0.0
        %1462 = vmatpush.msra.mxu0 0.0
        %1463 = vmatpush.msra.mxu0 %v1444
        %1464 = vmatmul.f32.gmra.mxu0 %v1446
        %v1465 = vpop.f32.mrf.mxu0
        %v1466 = vadd.f32 0.0, %v1465
        %1467 = vdwg.mxu0
        %1469 = vrot.lane.b32.xlu0 %v1466, 24
        %v1470 = vpop.permute.xlu0 %1469
        %vm1472 = vcmask 254144
        %1473 = vst.msk [vmem:[#allocation3] sm:$0x1] %vm1472, %v1470
        %v1474 = vld [vmem:[#allocation3] sm:$0x1]
        %s1475 = scalar_lea.vmem %s8, 32
        %v1476 = vld [vmem:[%s1475] sm:$0xff]
        %v1477 = vld [vmem:[%s1475 + $0x8] sm:$0xff]
        %v1478 = vld [vmem:[%s1475 + $0x10] sm:$0xff]
        %v1479 = vld [vmem:[%s1475 + $0x18] sm:$0xff]
        %s1480 = scalar_lea.vmem %s9, 1
        %v1481 = vld [vmem:[%s1480] sm:$0x1]
        %v1483 = vsel %vm637, %v1474, 0
        %1485 = vmatpush.msra.mxu0 0.0
        %1486 = vmatpush.msra.mxu0 0.0
        %1487 = vmatpush.msra.mxu0 0.0
        %1488 = vmatpush.msra.mxu0 0.0
        %1489 = vmatpush.msra.mxu0 0.0
        %1490 = vmatpush.msra.mxu0 0.0
        %1491 = vmatpush.msra.mxu0 0.0
        %1492 = vmatpush.msra.mxu0 0.0
        %1493 = vmatpush.msra.mxu0 0.0
        %1494 = vmatpush.msra.mxu0 0.0
        %1495 = vmatpush.msra.mxu0 0.0
        %1496 = vmatpush.msra.mxu0 0.0
        %1497 = vmatpush.msra.mxu0 %v1479
        %1498 = vmatpush.msra.mxu0 %v1478
        %1499 = vmatpush.msra.mxu0 %v1477
        %1500 = vmatpush.msra.mxu0 %v1476
        %1501 = vmatmul.f32.gmra.mxu0 %v1483
        %v1502 = vpop.f32.mrf.mxu0
        %v1503 = vadd.f32 %v1481, %v1502
        %1504 = vdwg.mxu0
        %v1505 = vadd.f32 %v1503, %v1180
        %s1506 = scalar_lea.vmem %s10, 1
        %v1507 = vld [vmem:[%s1506] sm:$0x1]
        %s1508 = scalar_lea.vmem %s11, 1
        %v1509 = vld [vmem:[%s1508] sm:$0x1]
        %vm1510 = vcmask 253952
        %v1511 = vsel %vm1510, %v1505, 0.0
        %1512 = vadd.xlane.f32.xlu0 %v1511
        %v1513 = vpop.xlane.xlu0 %1512
        %v1514 = vmul.f32 %v1513, %v647
        %v1515 = vsub.f32 %v1505, %v1514
        %v1516 = vmul.f32 %v1515, %v1515
        %v1517 = vsel %vm1510, %v1516, 0.0
        %1518 = vadd.xlane.f32.xlu0 %v1517
        %v1519 = vpop.xlane.xlu0 %1518
        %v1520 = vmul.f32 %v1519, %v647
        %v1521 = vadd.f32 %v1520, 1e-12
        %v1522 = vrsqrt.pop %v1521
        %v1523 = vmul.f32 %v1522, %v1521
        %v1524 = vmul.f32 %v1523, %v1522
        %v1525 = vmul.f32 0.5, %v1524
        %v1526 = vsub.f32 1.5, %v1525
        %v1527 = vmul.f32 %v1522, %v1526
        %vm1528 = vweird.f32 %v1521
        %vm1529 = vweird.f32 %v1522
        %vm1530 = vmor %vm1528, %vm1529
        %v1531 = vsel %vm1530, %v1522, %v1527
        %v1532 = vmul.f32 %v1515, %v1531
        %v1533 = vmul.f32 %v1532, %v1507
        %v1534 = vadd.f32 %v1533, %v1509
        %s1535 = scalar_lea.vmem %s12, 32
        %v1536 = vld [vmem:[%s1535] sm:$0xff]
        %v1537 = vld [vmem:[%s1535 + $0x8] sm:$0xff]
        %v1538 = vld [vmem:[%s1535 + $0x10] sm:$0xff]
        %v1539 = vld [vmem:[%s1535 + $0x18] sm:$0xff]
        %s1540 = scalar_lea.vmem %s13, 1
        %v1541 = vld [vmem:[%s1540] sm:$0x1]
        %v1543 = vsel %vm637, %v1534, 0
        %1545 = vmatpush.msra.mxu0 0.0
        %1546 = vmatpush.msra.mxu0 0.0
        %1547 = vmatpush.msra.mxu0 0.0
        %1548 = vmatpush.msra.mxu0 0.0
        %1549 = vmatpush.msra.mxu0 0.0
        %1550 = vmatpush.msra.mxu0 0.0
        %1551 = vmatpush.msra.mxu0 0.0
        %1552 = vmatpush.msra.mxu0 0.0
        %1553 = vmatpush.msra.mxu0 0.0
        %1554 = vmatpush.msra.mxu0 0.0
        %1555 = vmatpush.msra.mxu0 0.0
        %1556 = vmatpush.msra.mxu0 0.0
        %1557 = vmatpush.msra.mxu0 %v1539
        %1558 = vmatpush.msra.mxu0 %v1538
        %1559 = vmatpush.msra.mxu0 %v1537
        %1560 = vmatpush.msra.mxu0 %v1536
        %1561 = vmatmul.f32.gmra.mxu0 %v1543
        %v1562 = vpop.f32.mrf.mxu0
        %v1563 = vadd.f32 %v1541, %v1562
        %1564 = vdwg.mxu0
        %v1565 = vmul.f32 %v1563, %v1563
        %v1566 = vmul.f32 %v1563, %v1565
        %v1567 = vmul.f32 %v1566, 0.044715
        %v1568 = vadd.f32 %v1563, %v1567
        %v1569 = vmul.f32 %v1568, 0.7978846
        %v1570 = vtanh.pop %v1569
        %v1571 = vadd.f32 %v1570, 1.0
        %v1572 = vmul.f32 %v1571, 0.5
        %v1573 = vmul.f32 %v1563, %v1572
        %s1574 = scalar_lea.vmem %s14, 64
        %v1575 = vld [vmem:[%s1574] sm:$0xff]
        %v1576 = vld [vmem:[%s1574 + $0x8] sm:$0xff]
        %v1577 = vld [vmem:[%s1574 + $0x10] sm:$0xff]
        %v1578 = vld [vmem:[%s1574 + $0x18] sm:$0xff]
        %v1579 = vld [vmem:[%s1574 + $0x20] sm:$0xff]
        %v1580 = vld [vmem:[%s1574 + $0x28] sm:$0xff]
        %v1581 = vld [vmem:[%s1574 + $0x30] sm:$0xff]
        %v1582 = vld [vmem:[%s1574 + $0x38] sm:$0xff]
        %s1583 = scalar_lea.vmem %s15, 1
        %v1584 = vld [vmem:[%s1583] sm:$0x1]
        %v1586 = vsel %vm1124, %v1573, 0
        %1588 = vmatpush.msra.mxu0 0.0
        %1589 = vmatpush.msra.mxu0 0.0
        %1590 = vmatpush.msra.mxu0 0.0
        %1591 = vmatpush.msra.mxu0 0.0
        %1592 = vmatpush.msra.mxu0 0.0
        %1593 = vmatpush.msra.mxu0 0.0
        %1594 = vmatpush.msra.mxu0 0.0
        %1595 = vmatpush.msra.mxu0 0.0
        %1596 = vmatpush.msra.mxu0 %v1582
        %1597 = vmatpush.msra.mxu0 %v1581
        %1598 = vmatpush.msra.mxu0 %v1580
        %1599 = vmatpush.msra.mxu0 %v1579
        %1600 = vmatpush.msra.mxu0 %v1578
        %1601 = vmatpush.msra.mxu0 %v1577
        %1602 = vmatpush.msra.mxu0 %v1576
        %1603 = vmatpush.msra.mxu0 %v1575
        %1604 = vmatmul.f32.gmra.mxu0 %v1586
        %v1605 = vpop.f32.mrf.mxu0
        %v1606 = vadd.f32 %v1584, %v1605
        %1607 = vdwg.mxu0
        %v1608 = vadd.f32 %v1606, %v1534
        %s1609 = scalar_lea.vmem %s16, 1
        %v1610 = vld [vmem:[%s1609] sm:$0x1]
        %s1611 = scalar_lea.vmem %s17, 1
        %v1612 = vld [vmem:[%s1611] sm:$0x1]
        %v1613 = vsel %vm1510, %v1608, 0.0
        %1614 = vadd.xlane.f32.xlu0 %v1613
        %v1615 = vpop.xlane.xlu0 %1614
        %v1616 = vmul.f32 %v1615, %v647
        %v1617 = vsub.f32 %v1608, %v1616
        %v1618 = vmul.f32 %v1617, %v1617
        %v1619 = vsel %vm1510, %v1618, 0.0
        %1620 = vadd.xlane.f32.xlu0 %v1619
        %v1621 = vpop.xlane.xlu0 %1620
        %v1622 = vmul.f32 %v1621, %v647
        %v1623 = vadd.f32 %v1622, 1e-12
        %v1624 = vrsqrt.pop %v1623
        %v1625 = vmul.f32 %v1624, %v1623
        %v1626 = vmul.f32 %v1625, %v1624
        %v1627 = vmul.f32 0.5, %v1626
        %v1628 = vsub.f32 1.5, %v1627
        %v1629 = vmul.f32 %v1624, %v1628
        %vm1630 = vweird.f32 %v1623
        %vm1631 = vweird.f32 %v1624
        %vm1632 = vmor %vm1630, %vm1631
        %v1633 = vsel %vm1632, %v1624, %v1629
        %v1634 = vmul.f32 %v1617, %v1633
        %v1635 = vmul.f32 %v1634, %v1610
        %v1636 = vadd.f32 %v1635, %v1612
        %1637 = vst.msk [vmem:[%s576] sm:$0x1] %vm1510, %v1636
        %s1638 = sand.u32 %s428, 1
        %s1639 = scalar_lea.sflag [#allocation5], %s1638
        %s1640 = sand.u32 %s428, 1
        %s1641 = scalar_lea.vmem [#allocation4], %s1640
        // Predicated region
        $region93: #{tpu_custom_call.1} parent=91 // pred_check
          %p1642 = pneg %p438
        $region94: #{tpu_custom_call.1} parent=91 // pred_check_branch
          %1644 = sbr.rel (%p1642) target = $region96
        $region95: #{tpu_custom_call.1} parent=91 // pred_region
          %1646 = vsyncadd %s1639, 0
          %s1647 = scalar_lea.hbm %s18, %s32
          %s1649 = sshll.u32 %s1641, 4
          %s1650 = int_to_ptr.vmem [resolvable:$true] %s1649
          %s1651 = sshll.u32 %s1647, 4
          %s1652 = int_to_ptr.hbm [resolvable:$true] %s1651
          %1654 = dma.vmem_to_hbm [thread:$0]  %s1650, 16, %s1652, %s1639
        $region96: #{tpu_custom_call.1} parent=91 // pred_fallthru
          _
      $region92: #{tpu_custom_call.1} parent=5 // pred_fallthru
        _
      %p1655 = scmp.le.s32.totalorder 2, %s27
      // Predicated region
      $region97: #{tpu_custom_call.1} parent=5 // pred_check
        %p1656 = pneg %p1655
      $region98: #{tpu_custom_call.1} parent=5 // pred_check_branch
        %1658 = sbr.rel (%p1656) target = $region100
      $region99: #{tpu_custom_call.1} parent=5 // pred_region
        %s1659 = ssub.s32 %s27, 2
        // Predicated region
        $region101: #{tpu_custom_call.1} parent=99 // pred_check
          %p1660 = pneg %p444
        $region102: #{tpu_custom_call.1} parent=99 // pred_check_branch
          %1662 = sbr.rel (%p1660) target = $region104
        $region103: #{tpu_custom_call.1} parent=99 // pred_region
          %s1663 = sand.u32 %s429, 1
          %s1664 = scalar_lea.sflag [#allocation5], %s1663
          %s1665 = sand.u32 %s429, 1
          %s1666 = scalar_lea.vmem [#allocation4], %s1665
          %1668 = dma.done %s1664, 16
        $region104: #{tpu_custom_call.1} parent=99 // pred_fallthru
          _
      $region100: #{tpu_custom_call.1} parent=5 // pred_fallthru
        _
    $region6: #{tpu_custom_call.1} parent=1 // loop_footer
      %s31 = sadd.s32 1, %s27
    $region7: #{tpu_custom_call.1} parent=1 // loop_footer_branch
      %26 = sbr.rel target = $region3
    $region8: #{tpu_custom_call.1} parent=1 // loop_exit
      _
    %1669 = vsyncpa [#allocation5], 1
    %s1670 = scalar_lea.sflag [#allocation5], 1
    %1671 = vsyncpa %s1670, 1

</llo_original>
